<compile_context>
chip_gen: v7x
topology: tpu7x:2x2x1
jax: 0.10.0
libtpu: 0.0.40
codegen_flags: <defaults>
</compile_context>

<pallas_src>
import functools

import jax
import jax.numpy as jnp
from jax.experimental import pallas as pl
from jax.experimental.pallas import tpu as pltpu


def _resnet_block_kernel(x_ref, w1_ref, b1_ref, w2_ref, b2_ref, o_ref, *, H, W, K1, K2):
    # x_ref : (N*C, H*W)        batch*channels on sublanes, flat spatial on lanes
    # w*_ref: (N*C, K*K*N*C)    batch-block-diagonal packed weights (see _pack_weight)
    # b*_ref: (N*C, 1)
    # o_ref : (N*C, H*W)        lane-dense output (flattened NCHW)
    NC, HW = x_ref.shape
    x = x_ref[...].astype(jnp.float32)          # also reused as the identity shortcut

    # Flat-position iota along lanes; (row, col) validity from integer compares.
    pos = jax.lax.broadcasted_iota(jnp.int32, (1, HW), 1)
    if W & (W - 1) == 0:
        col = pos & (W - 1)                      # W power of two: cheap bit mask
    else:
        col = pos % W                            # TODO(synk): fall back to host masks if vector rem doesn't lower

    _mask_cache = {}

    def taps_for(K):
        """[(flat_delta, valid_mask)] per conv tap under TF 'SAME' padding, stride 1."""
        if K in _mask_cache:
            return _mask_cache[K]
        pad = (K - 1) // 2
        taps = []
        for kh in range(K):
            dy = kh - pad
            for kw in range(K):
                dx = kw - pad
                # r + dy in [0, H)  <=>  flat index in [(-dy)*W, (H - dy)*W)
                row_ok = (pos >= (-dy) * W) & (pos < (H - dy) * W)
                col_ok = (col >= -dx) & (col < W - dx)
                taps.append((dy * W + dx, row_ok & col_ok))
        _mask_cache[K] = taps
        return taps

    def conv_same(inp, w_ref, b_ref, K):
        """Stride-1 SAME conv for all images at once: masked lane-rolls (XLU) build
        the im2col tile, a single MXU dot does the whole contraction."""
        cols = []
        for delta, ok in taps_for(K):
            shifted = inp if delta == 0 else pltpu.roll(inp, (-delta) % HW, axis=1)
            cols.append(jnp.where(ok, shifted, 0.0))       # true zero-padding, NaN-safe
        im2col = jnp.concatenate(cols, axis=0)              # (K*K*NC, HW)
        out = jnp.dot(w_ref[...], im2col,
                      preferred_element_type=jnp.float32,
                      precision=jax.lax.Precision.HIGHEST)  # (NC, HW) on the MXU
        return out + b_ref[...]                              # (NC, 1) bias broadcast

    y = jnp.maximum(conv_same(x, w1_ref, b1_ref, K1), 0.0)    # conv1 + ReLU
    y = jnp.maximum(conv_same(y, w2_ref, b2_ref, K2), 0.0)    # conv2 + ReLU
    o_ref[...] = jnp.maximum(y + x, 0.0).astype(o_ref.dtype)  # + shortcut, ReLU


def _pack_weight(w_hwio, C, K, N):
    """(K, K, Cin, Cout) HWIO -> (N*C, K*K*N*C) weight, block-diagonal over the batch,
    matching the kernel's im2col row order (tap, image, in-channel)."""
    w2d = w_hwio.reshape(K * K * C, C).T             # (Cout, K*K*Cin)
    w3 = w2d.reshape(C, K * K, C)                     # [co, tap, ci]
    eye = jnp.eye(N, dtype=w3.dtype)
    wp = jnp.einsum("nm,otc->notmc", eye, w3)         # [n, co, tap, m, ci]
    return wp.reshape(N * C, K * K * N * C)


def resnet_block_forward(x_nchw, params, *, k1, k2, stride=1):
    """Fused Pallas implementation of ResNetBlock.forward (NCHW in / NCHW out)."""
    assert stride == 1, "identity shortcut requires stride == 1"
    N, C, H, W = x_nchw.shape
    HW = H * W
    NC = N * C

    x2d = x_nchw.reshape(NC, HW)                       # free reshape (contiguous dims)
    w1p = _pack_weight(params["w1"], C, k1, N)
    w2p = _pack_weight(params["w2"], C, k2, N)
    b1p = jnp.tile(params["b1"].reshape(1, C), (N, 1)).reshape(NC, 1)
    b2p = jnp.tile(params["b2"].reshape(1, C), (N, 1)).reshape(NC, 1)

    kernel = functools.partial(_resnet_block_kernel, H=H, W=W, K1=k1, K2=k2)

    out2d = pl.pallas_call(
        kernel,
        out_shape=jax.ShapeDtypeStruct((NC, HW), x_nchw.dtype),
        grid=(1,),
        in_specs=[
            pl.BlockSpec((NC, HW), lambda i: (0, 0)),                 # x (whole batch)
            pl.BlockSpec((NC, k1 * k1 * NC), lambda i: (0, 0)),       # packed w1
            pl.BlockSpec((NC, 1), lambda i: (0, 0)),                  # packed b1
            pl.BlockSpec((NC, k2 * k2 * NC), lambda i: (0, 0)),       # packed w2
            pl.BlockSpec((NC, 1), lambda i: (0, 0)),                  # packed b2
        ],
        out_specs=pl.BlockSpec((NC, HW), lambda i: (0, 0)),
        compiler_params=pltpu.CompilerParams(dimension_semantics=("arbitrary",)),
    )(x2d, w1p, b1p, w2p, b2p)

    return out2d.reshape(N, C, H, W)


# ----------------------------- pure-JAX reference -----------------------------------

def _same_pad_nhwc(x, k, stride=1):
    """Replicates Conv2dSamePad (TF 'SAME': extra pad goes to bottom/right)."""
    _, h, w, _ = x.shape
    out_h = -(-h // stride)
    out_w = -(-w // stride)
    pad_h = max((out_h - 1) * stride + k - h, 0)
    pad_w = max((out_w - 1) * stride + k - w, 0)
    pt, pb = pad_h // 2, pad_h - pad_h // 2
    pleft, pright = pad_w // 2, pad_w - pad_w // 2
    return jnp.pad(x, ((0, 0), (pt, pb), (pleft, pright), (0, 0)))


def _reference_forward(x_nchw, params, *, k1, k2):
    """Pure-JAX reference (mirrors the PyTorch forward) for verification."""
    x = jnp.transpose(x_nchw, (0, 2, 3, 1))

    def conv(xx, w, b, k):
        xp = _same_pad_nhwc(xx, k, 1)
        y = jax.lax.conv_general_dilated(
            xp, w, (1, 1), "VALID",
            dimension_numbers=("NHWC", "HWIO", "NHWC"),
            precision=jax.lax.Precision.HIGHEST)
        return y + b[None, None, None, :]

    y = jax.nn.relu(conv(x, params["w1"], params["b1"], k1))
    y = jax.nn.relu(conv(y, params["w2"], params["b2"], k2))
    out = jax.nn.relu(y + x)
    return jnp.transpose(out, (0, 3, 1, 2))


if __name__ == "__main__":
    # Shapes implied by the module: NCHW input, in_channel == out_channel, stride 1.
    N, C, H, W = 2, 4, 16, 16
    k1 = k2 = 3

    key = jax.random.PRNGKey(0)
    kx, kw1, kb1, kw2, kb2 = jax.random.split(key, 5)

    x = jax.random.normal(kx, (N, C, H, W), jnp.float32)

    # Deterministic parameter init (PyTorch-style uniform(-1/sqrt(fan_in), ...)),
    # stored HWIO; the wrapper packs them into the kernel's batch-block-diagonal layout.
    bound1 = 1.0 / jnp.sqrt(C * k1 * k1)
    bound2 = 1.0 / jnp.sqrt(C * k2 * k2)
    params = {
        "w1": jax.random.uniform(kw1, (k1, k1, C, C), jnp.float32, -bound1, bound1),
        "b1": jax.random.uniform(kb1, (C,), jnp.float32, -bound1, bound1),
        "w2": jax.random.uniform(kw2, (k2, k2, C, C), jnp.float32, -bound2, bound2),
        "b2": jax.random.uniform(kb2, (C,), jnp.float32, -bound2, bound2),
    }

    fwd = jax.jit(functools.partial(resnet_block_forward, k1=k1, k2=k2))
    out = fwd(x, params)
    jax.block_until_ready(out)

    ref = _reference_forward(x, params, k1=k1, k2=k2)
    assert out.shape == (N, C, H, W)
    assert jnp.allclose(out, ref, atol=1e-4, rtol=1e-4), "mismatch vs reference"

    print("KERNEL_OK")
</pallas_src>

<mosaic_0001>
module attributes {stable_mosaic.version = 11 : i64} {
  func.func @_resnet_block_kernel(%arg0: i32, %arg1: memref<8x256xf32, #tpu.memory_space<vmem>>, %arg2: memref<8x72xf32, #tpu.memory_space<vmem>>, %arg3: memref<8x1xf32, #tpu.memory_space<vmem>>, %arg4: memref<8x72xf32, #tpu.memory_space<vmem>>, %arg5: memref<8x1xf32, #tpu.memory_space<vmem>>, %arg6: memref<8x256xf32, #tpu.memory_space<vmem>>) attributes {dimension_semantics = [#tpu.dimension_semantics<arbitrary>], iteration_bounds = array<i64: 1>, scalar_prefetch = 0 : i64, scratch_operands = 0 : i64, tpu.core_type = #tpu.core_type<tc>, window_params = [{pipeline_mode = #tpu.pipeline_mode<synchronous>, transform_indices = @transform_0, window_bounds = array<i64: 8, 256>}, {pipeline_mode = #tpu.pipeline_mode<synchronous>, transform_indices = @transform_1, window_bounds = array<i64: 8, 72>}, {pipeline_mode = #tpu.pipeline_mode<synchronous>, transform_indices = @transform_2, window_bounds = array<i64: 8, 1>}, {pipeline_mode = #tpu.pipeline_mode<synchronous>, transform_indices = @transform_3, window_bounds = array<i64: 8, 72>}, {pipeline_mode = #tpu.pipeline_mode<synchronous>, transform_indices = @transform_4, window_bounds = array<i64: 8, 1>}, {pipeline_mode = #tpu.pipeline_mode<synchronous>, transform_indices = @transform_5, window_bounds = array<i64: 8, 256>}]} {
    %c0 = arith.constant 0 : index
    %c0_0 = arith.constant 0 : index
    %0 = vector.load %arg1[%c0, %c0_0] : memref<8x256xf32, #tpu.memory_space<vmem>>, vector<8x256xf32>
    %1 = tpu.iota {dimensions = array<i32: 1>} : vector<1x256xi32>
    %c15_i32 = arith.constant 15 : i32
    %2 = vector.broadcast %c15_i32 : i32 to vector<1x256xi32>
    %3 = arith.andi %1, %2 : vector<1x256xi32>
    %c16_i32 = arith.constant 16 : i32
    %4 = vector.broadcast %c16_i32 : i32 to vector<1x256xi32>
    %5 = arith.cmpi sge, %1, %4 : vector<1x256xi32>
    %c272_i32 = arith.constant 272 : i32
    %6 = vector.broadcast %c272_i32 : i32 to vector<1x256xi32>
    %7 = arith.cmpi slt, %1, %6 : vector<1x256xi32>
    %8 = arith.andi %5, %7 : vector<1x256xi1>
    %c1_i32 = arith.constant 1 : i32
    %9 = vector.broadcast %c1_i32 : i32 to vector<1x256xi32>
    %10 = arith.cmpi sge, %3, %9 : vector<1x256xi32>
    %c17_i32 = arith.constant 17 : i32
    %11 = vector.broadcast %c17_i32 : i32 to vector<1x256xi32>
    %12 = arith.cmpi slt, %3, %11 : vector<1x256xi32>
    %13 = arith.andi %10, %12 : vector<1x256xi1>
    %14 = arith.andi %8, %13 : vector<1x256xi1>
    %c16_i32_1 = arith.constant 16 : i32
    %15 = vector.broadcast %c16_i32_1 : i32 to vector<1x256xi32>
    %16 = arith.cmpi sge, %1, %15 : vector<1x256xi32>
    %c272_i32_2 = arith.constant 272 : i32
    %17 = vector.broadcast %c272_i32_2 : i32 to vector<1x256xi32>
    %18 = arith.cmpi slt, %1, %17 : vector<1x256xi32>
    %19 = arith.andi %16, %18 : vector<1x256xi1>
    %c0_i32 = arith.constant 0 : i32
    %20 = vector.broadcast %c0_i32 : i32 to vector<1x256xi32>
    %21 = arith.cmpi sge, %3, %20 : vector<1x256xi32>
    %c16_i32_3 = arith.constant 16 : i32
    %22 = vector.broadcast %c16_i32_3 : i32 to vector<1x256xi32>
    %23 = arith.cmpi slt, %3, %22 : vector<1x256xi32>
    %24 = arith.andi %21, %23 : vector<1x256xi1>
    %25 = arith.andi %19, %24 : vector<1x256xi1>
    %c16_i32_4 = arith.constant 16 : i32
    %26 = vector.broadcast %c16_i32_4 : i32 to vector<1x256xi32>
    %27 = arith.cmpi sge, %1, %26 : vector<1x256xi32>
    %c272_i32_5 = arith.constant 272 : i32
    %28 = vector.broadcast %c272_i32_5 : i32 to vector<1x256xi32>
    %29 = arith.cmpi slt, %1, %28 : vector<1x256xi32>
    %30 = arith.andi %27, %29 : vector<1x256xi1>
    %c-1_i32 = arith.constant -1 : i32
    %31 = vector.broadcast %c-1_i32 : i32 to vector<1x256xi32>
    %32 = arith.cmpi sge, %3, %31 : vector<1x256xi32>
    %c15_i32_6 = arith.constant 15 : i32
    %33 = vector.broadcast %c15_i32_6 : i32 to vector<1x256xi32>
    %34 = arith.cmpi slt, %3, %33 : vector<1x256xi32>
    %35 = arith.andi %32, %34 : vector<1x256xi1>
    %36 = arith.andi %30, %35 : vector<1x256xi1>
    %c0_i32_7 = arith.constant 0 : i32
    %37 = vector.broadcast %c0_i32_7 : i32 to vector<1x256xi32>
    %38 = arith.cmpi sge, %1, %37 : vector<1x256xi32>
    %c256_i32 = arith.constant 256 : i32
    %39 = vector.broadcast %c256_i32 : i32 to vector<1x256xi32>
    %40 = arith.cmpi slt, %1, %39 : vector<1x256xi32>
    %41 = arith.andi %38, %40 : vector<1x256xi1>
    %c1_i32_8 = arith.constant 1 : i32
    %42 = vector.broadcast %c1_i32_8 : i32 to vector<1x256xi32>
    %43 = arith.cmpi sge, %3, %42 : vector<1x256xi32>
    %c17_i32_9 = arith.constant 17 : i32
    %44 = vector.broadcast %c17_i32_9 : i32 to vector<1x256xi32>
    %45 = arith.cmpi slt, %3, %44 : vector<1x256xi32>
    %46 = arith.andi %43, %45 : vector<1x256xi1>
    %47 = arith.andi %41, %46 : vector<1x256xi1>
    %c0_i32_10 = arith.constant 0 : i32
    %48 = vector.broadcast %c0_i32_10 : i32 to vector<1x256xi32>
    %49 = arith.cmpi sge, %1, %48 : vector<1x256xi32>
    %c256_i32_11 = arith.constant 256 : i32
    %50 = vector.broadcast %c256_i32_11 : i32 to vector<1x256xi32>
    %51 = arith.cmpi slt, %1, %50 : vector<1x256xi32>
    %52 = arith.andi %49, %51 : vector<1x256xi1>
    %c0_i32_12 = arith.constant 0 : i32
    %53 = vector.broadcast %c0_i32_12 : i32 to vector<1x256xi32>
    %54 = arith.cmpi sge, %3, %53 : vector<1x256xi32>
    %c16_i32_13 = arith.constant 16 : i32
    %55 = vector.broadcast %c16_i32_13 : i32 to vector<1x256xi32>
    %56 = arith.cmpi slt, %3, %55 : vector<1x256xi32>
    %57 = arith.andi %54, %56 : vector<1x256xi1>
    %58 = arith.andi %52, %57 : vector<1x256xi1>
    %c0_i32_14 = arith.constant 0 : i32
    %59 = vector.broadcast %c0_i32_14 : i32 to vector<1x256xi32>
    %60 = arith.cmpi sge, %1, %59 : vector<1x256xi32>
    %c256_i32_15 = arith.constant 256 : i32
    %61 = vector.broadcast %c256_i32_15 : i32 to vector<1x256xi32>
    %62 = arith.cmpi slt, %1, %61 : vector<1x256xi32>
    %63 = arith.andi %60, %62 : vector<1x256xi1>
    %c-1_i32_16 = arith.constant -1 : i32
    %64 = vector.broadcast %c-1_i32_16 : i32 to vector<1x256xi32>
    %65 = arith.cmpi sge, %3, %64 : vector<1x256xi32>
    %c15_i32_17 = arith.constant 15 : i32
    %66 = vector.broadcast %c15_i32_17 : i32 to vector<1x256xi32>
    %67 = arith.cmpi slt, %3, %66 : vector<1x256xi32>
    %68 = arith.andi %65, %67 : vector<1x256xi1>
    %69 = arith.andi %63, %68 : vector<1x256xi1>
    %c-16_i32 = arith.constant -16 : i32
    %70 = vector.broadcast %c-16_i32 : i32 to vector<1x256xi32>
    %71 = arith.cmpi sge, %1, %70 : vector<1x256xi32>
    %c240_i32 = arith.constant 240 : i32
    %72 = vector.broadcast %c240_i32 : i32 to vector<1x256xi32>
    %73 = arith.cmpi slt, %1, %72 : vector<1x256xi32>
    %74 = arith.andi %71, %73 : vector<1x256xi1>
    %c1_i32_18 = arith.constant 1 : i32
    %75 = vector.broadcast %c1_i32_18 : i32 to vector<1x256xi32>
    %76 = arith.cmpi sge, %3, %75 : vector<1x256xi32>
    %c17_i32_19 = arith.constant 17 : i32
    %77 = vector.broadcast %c17_i32_19 : i32 to vector<1x256xi32>
    %78 = arith.cmpi slt, %3, %77 : vector<1x256xi32>
    %79 = arith.andi %76, %78 : vector<1x256xi1>
    %80 = arith.andi %74, %79 : vector<1x256xi1>
    %c-16_i32_20 = arith.constant -16 : i32
    %81 = vector.broadcast %c-16_i32_20 : i32 to vector<1x256xi32>
    %82 = arith.cmpi sge, %1, %81 : vector<1x256xi32>
    %c240_i32_21 = arith.constant 240 : i32
    %83 = vector.broadcast %c240_i32_21 : i32 to vector<1x256xi32>
    %84 = arith.cmpi slt, %1, %83 : vector<1x256xi32>
    %85 = arith.andi %82, %84 : vector<1x256xi1>
    %c0_i32_22 = arith.constant 0 : i32
    %86 = vector.broadcast %c0_i32_22 : i32 to vector<1x256xi32>
    %87 = arith.cmpi sge, %3, %86 : vector<1x256xi32>
    %c16_i32_23 = arith.constant 16 : i32
    %88 = vector.broadcast %c16_i32_23 : i32 to vector<1x256xi32>
    %89 = arith.cmpi slt, %3, %88 : vector<1x256xi32>
    %90 = arith.andi %87, %89 : vector<1x256xi1>
    %91 = arith.andi %85, %90 : vector<1x256xi1>
    %c-16_i32_24 = arith.constant -16 : i32
    %92 = vector.broadcast %c-16_i32_24 : i32 to vector<1x256xi32>
    %93 = arith.cmpi sge, %1, %92 : vector<1x256xi32>
    %c240_i32_25 = arith.constant 240 : i32
    %94 = vector.broadcast %c240_i32_25 : i32 to vector<1x256xi32>
    %95 = arith.cmpi slt, %1, %94 : vector<1x256xi32>
    %96 = arith.andi %93, %95 : vector<1x256xi1>
    %c-1_i32_26 = arith.constant -1 : i32
    %97 = vector.broadcast %c-1_i32_26 : i32 to vector<1x256xi32>
    %98 = arith.cmpi sge, %3, %97 : vector<1x256xi32>
    %c15_i32_27 = arith.constant 15 : i32
    %99 = vector.broadcast %c15_i32_27 : i32 to vector<1x256xi32>
    %100 = arith.cmpi slt, %3, %99 : vector<1x256xi32>
    %101 = arith.andi %98, %100 : vector<1x256xi1>
    %102 = arith.andi %96, %101 : vector<1x256xi1>
    %c17_i32_28 = arith.constant 17 : i32
    %103 = tpu.dynamic_rotate %0 by %c17_i32_28 dim 1 : vector<8x256xf32>, i32 -> vector<8x256xf32>
    %cst = arith.constant 0.000000e+00 : f32
    %104 = vector.shape_cast %14 : vector<1x256xi1> to vector<1x256xi1>
    %105 = vector.broadcast %104 : vector<1x256xi1> to vector<8x256xi1>
    %106 = vector.broadcast %cst : f32 to vector<8x256xf32>
    %107 = arith.select %105, %103, %106 : vector<8x256xi1>, vector<8x256xf32>
    %c16_i32_29 = arith.constant 16 : i32
    %108 = tpu.dynamic_rotate %0 by %c16_i32_29 dim 1 : vector<8x256xf32>, i32 -> vector<8x256xf32>
    %cst_30 = arith.constant 0.000000e+00 : f32
    %109 = vector.shape_cast %25 : vector<1x256xi1> to vector<1x256xi1>
    %110 = vector.broadcast %109 : vector<1x256xi1> to vector<8x256xi1>
    %111 = vector.broadcast %cst_30 : f32 to vector<8x256xf32>
    %112 = arith.select %110, %108, %111 : vector<8x256xi1>, vector<8x256xf32>
    %c15_i32_31 = arith.constant 15 : i32
    %113 = tpu.dynamic_rotate %0 by %c15_i32_31 dim 1 : vector<8x256xf32>, i32 -> vector<8x256xf32>
    %cst_32 = arith.constant 0.000000e+00 : f32
    %114 = vector.shape_cast %36 : vector<1x256xi1> to vector<1x256xi1>
    %115 = vector.broadcast %114 : vector<1x256xi1> to vector<8x256xi1>
    %116 = vector.broadcast %cst_32 : f32 to vector<8x256xf32>
    %117 = arith.select %115, %113, %116 : vector<8x256xi1>, vector<8x256xf32>
    %c1_i32_33 = arith.constant 1 : i32
    %118 = tpu.dynamic_rotate %0 by %c1_i32_33 dim 1 : vector<8x256xf32>, i32 -> vector<8x256xf32>
    %cst_34 = arith.constant 0.000000e+00 : f32
    %119 = vector.shape_cast %47 : vector<1x256xi1> to vector<1x256xi1>
    %120 = vector.broadcast %119 : vector<1x256xi1> to vector<8x256xi1>
    %121 = vector.broadcast %cst_34 : f32 to vector<8x256xf32>
    %122 = arith.select %120, %118, %121 : vector<8x256xi1>, vector<8x256xf32>
    %cst_35 = arith.constant 0.000000e+00 : f32
    %123 = vector.shape_cast %58 : vector<1x256xi1> to vector<1x256xi1>
    %124 = vector.broadcast %123 : vector<1x256xi1> to vector<8x256xi1>
    %125 = vector.broadcast %cst_35 : f32 to vector<8x256xf32>
    %126 = arith.select %124, %0, %125 : vector<8x256xi1>, vector<8x256xf32>
    %c255_i32 = arith.constant 255 : i32
    %127 = tpu.dynamic_rotate %0 by %c255_i32 dim 1 : vector<8x256xf32>, i32 -> vector<8x256xf32>
    %cst_36 = arith.constant 0.000000e+00 : f32
    %128 = vector.shape_cast %69 : vector<1x256xi1> to vector<1x256xi1>
    %129 = vector.broadcast %128 : vector<1x256xi1> to vector<8x256xi1>
    %130 = vector.broadcast %cst_36 : f32 to vector<8x256xf32>
    %131 = arith.select %129, %127, %130 : vector<8x256xi1>, vector<8x256xf32>
    %c241_i32 = arith.constant 241 : i32
    %132 = tpu.dynamic_rotate %0 by %c241_i32 dim 1 : vector<8x256xf32>, i32 -> vector<8x256xf32>
    %cst_37 = arith.constant 0.000000e+00 : f32
    %133 = vector.shape_cast %80 : vector<1x256xi1> to vector<1x256xi1>
    %134 = vector.broadcast %133 : vector<1x256xi1> to vector<8x256xi1>
    %135 = vector.broadcast %cst_37 : f32 to vector<8x256xf32>
    %136 = arith.select %134, %132, %135 : vector<8x256xi1>, vector<8x256xf32>
    %c240_i32_38 = arith.constant 240 : i32
    %137 = tpu.dynamic_rotate %0 by %c240_i32_38 dim 1 : vector<8x256xf32>, i32 -> vector<8x256xf32>
    %cst_39 = arith.constant 0.000000e+00 : f32
    %138 = vector.shape_cast %91 : vector<1x256xi1> to vector<1x256xi1>
    %139 = vector.broadcast %138 : vector<1x256xi1> to vector<8x256xi1>
    %140 = vector.broadcast %cst_39 : f32 to vector<8x256xf32>
    %141 = arith.select %139, %137, %140 : vector<8x256xi1>, vector<8x256xf32>
    %c239_i32 = arith.constant 239 : i32
    %142 = tpu.dynamic_rotate %0 by %c239_i32 dim 1 : vector<8x256xf32>, i32 -> vector<8x256xf32>
    %cst_40 = arith.constant 0.000000e+00 : f32
    %143 = vector.shape_cast %102 : vector<1x256xi1> to vector<1x256xi1>
    %144 = vector.broadcast %143 : vector<1x256xi1> to vector<8x256xi1>
    %145 = vector.broadcast %cst_40 : f32 to vector<8x256xf32>
    %146 = arith.select %144, %142, %145 : vector<8x256xi1>, vector<8x256xf32>
    %147 = tpu.concatenate %107, %112, %117, %122, %126, %131, %136, %141, %146 in 0 : vector<8x256xf32>, vector<8x256xf32>, vector<8x256xf32>, vector<8x256xf32>, vector<8x256xf32>, vector<8x256xf32>, vector<8x256xf32>, vector<8x256xf32>, vector<8x256xf32> -> vector<72x256xf32>
    %c0_41 = arith.constant 0 : index
    %c0_42 = arith.constant 0 : index
    %148 = vector.load %arg2[%c0_41, %c0_42] : memref<8x72xf32, #tpu.memory_space<vmem>>, vector<8x72xf32>
    %cst_43 = arith.constant dense<0.000000e+00> : vector<8x256xf32>
    %149 = tpu.matmul %148, %147, %cst_43 {dimension_numbers = #tpu.dot_dimension_numbers<[1], [0], [0], [1], [0, 0, 1, 1], [], []>, precision = #tpu.contract_precision<fp32>} : vector<8x72xf32>, vector<72x256xf32>, vector<8x256xf32> -> vector<8x256xf32>
    %c0_44 = arith.constant 0 : index
    %c0_45 = arith.constant 0 : index
    %150 = vector.load %arg3[%c0_44, %c0_45] : memref<8x1xf32, #tpu.memory_space<vmem>>, vector<8x1xf32>
    %151 = vector.broadcast %150 : vector<8x1xf32> to vector<8x256xf32>
    %152 = arith.addf %149, %151 : vector<8x256xf32>
    %cst_46 = arith.constant 0.000000e+00 : f32
    %153 = vector.broadcast %cst_46 : f32 to vector<8x256xf32>
    %154 = arith.maximumf %152, %153 : vector<8x256xf32>
    %c17_i32_47 = arith.constant 17 : i32
    %155 = tpu.dynamic_rotate %154 by %c17_i32_47 dim 1 : vector<8x256xf32>, i32 -> vector<8x256xf32>
    %cst_48 = arith.constant 0.000000e+00 : f32
    %156 = vector.shape_cast %14 : vector<1x256xi1> to vector<1x256xi1>
    %157 = vector.broadcast %156 : vector<1x256xi1> to vector<8x256xi1>
    %158 = vector.broadcast %cst_48 : f32 to vector<8x256xf32>
    %159 = arith.select %157, %155, %158 : vector<8x256xi1>, vector<8x256xf32>
    %c16_i32_49 = arith.constant 16 : i32
    %160 = tpu.dynamic_rotate %154 by %c16_i32_49 dim 1 : vector<8x256xf32>, i32 -> vector<8x256xf32>
    %cst_50 = arith.constant 0.000000e+00 : f32
    %161 = vector.shape_cast %25 : vector<1x256xi1> to vector<1x256xi1>
    %162 = vector.broadcast %161 : vector<1x256xi1> to vector<8x256xi1>
    %163 = vector.broadcast %cst_50 : f32 to vector<8x256xf32>
    %164 = arith.select %162, %160, %163 : vector<8x256xi1>, vector<8x256xf32>
    %c15_i32_51 = arith.constant 15 : i32
    %165 = tpu.dynamic_rotate %154 by %c15_i32_51 dim 1 : vector<8x256xf32>, i32 -> vector<8x256xf32>
    %cst_52 = arith.constant 0.000000e+00 : f32
    %166 = vector.shape_cast %36 : vector<1x256xi1> to vector<1x256xi1>
    %167 = vector.broadcast %166 : vector<1x256xi1> to vector<8x256xi1>
    %168 = vector.broadcast %cst_52 : f32 to vector<8x256xf32>
    %169 = arith.select %167, %165, %168 : vector<8x256xi1>, vector<8x256xf32>
    %c1_i32_53 = arith.constant 1 : i32
    %170 = tpu.dynamic_rotate %154 by %c1_i32_53 dim 1 : vector<8x256xf32>, i32 -> vector<8x256xf32>
    %cst_54 = arith.constant 0.000000e+00 : f32
    %171 = vector.shape_cast %47 : vector<1x256xi1> to vector<1x256xi1>
    %172 = vector.broadcast %171 : vector<1x256xi1> to vector<8x256xi1>
    %173 = vector.broadcast %cst_54 : f32 to vector<8x256xf32>
    %174 = arith.select %172, %170, %173 : vector<8x256xi1>, vector<8x256xf32>
    %cst_55 = arith.constant 0.000000e+00 : f32
    %175 = vector.shape_cast %58 : vector<1x256xi1> to vector<1x256xi1>
    %176 = vector.broadcast %175 : vector<1x256xi1> to vector<8x256xi1>
    %177 = vector.broadcast %cst_55 : f32 to vector<8x256xf32>
    %178 = arith.select %176, %154, %177 : vector<8x256xi1>, vector<8x256xf32>
    %c255_i32_56 = arith.constant 255 : i32
    %179 = tpu.dynamic_rotate %154 by %c255_i32_56 dim 1 : vector<8x256xf32>, i32 -> vector<8x256xf32>
    %cst_57 = arith.constant 0.000000e+00 : f32
    %180 = vector.shape_cast %69 : vector<1x256xi1> to vector<1x256xi1>
    %181 = vector.broadcast %180 : vector<1x256xi1> to vector<8x256xi1>
    %182 = vector.broadcast %cst_57 : f32 to vector<8x256xf32>
    %183 = arith.select %181, %179, %182 : vector<8x256xi1>, vector<8x256xf32>
    %c241_i32_58 = arith.constant 241 : i32
    %184 = tpu.dynamic_rotate %154 by %c241_i32_58 dim 1 : vector<8x256xf32>, i32 -> vector<8x256xf32>
    %cst_59 = arith.constant 0.000000e+00 : f32
    %185 = vector.shape_cast %80 : vector<1x256xi1> to vector<1x256xi1>
    %186 = vector.broadcast %185 : vector<1x256xi1> to vector<8x256xi1>
    %187 = vector.broadcast %cst_59 : f32 to vector<8x256xf32>
    %188 = arith.select %186, %184, %187 : vector<8x256xi1>, vector<8x256xf32>
    %c240_i32_60 = arith.constant 240 : i32
    %189 = tpu.dynamic_rotate %154 by %c240_i32_60 dim 1 : vector<8x256xf32>, i32 -> vector<8x256xf32>
    %cst_61 = arith.constant 0.000000e+00 : f32
    %190 = vector.shape_cast %91 : vector<1x256xi1> to vector<1x256xi1>
    %191 = vector.broadcast %190 : vector<1x256xi1> to vector<8x256xi1>
    %192 = vector.broadcast %cst_61 : f32 to vector<8x256xf32>
    %193 = arith.select %191, %189, %192 : vector<8x256xi1>, vector<8x256xf32>
    %c239_i32_62 = arith.constant 239 : i32
    %194 = tpu.dynamic_rotate %154 by %c239_i32_62 dim 1 : vector<8x256xf32>, i32 -> vector<8x256xf32>
    %cst_63 = arith.constant 0.000000e+00 : f32
    %195 = vector.shape_cast %102 : vector<1x256xi1> to vector<1x256xi1>
    %196 = vector.broadcast %195 : vector<1x256xi1> to vector<8x256xi1>
    %197 = vector.broadcast %cst_63 : f32 to vector<8x256xf32>
    %198 = arith.select %196, %194, %197 : vector<8x256xi1>, vector<8x256xf32>
    %199 = tpu.concatenate %159, %164, %169, %174, %178, %183, %188, %193, %198 in 0 : vector<8x256xf32>, vector<8x256xf32>, vector<8x256xf32>, vector<8x256xf32>, vector<8x256xf32>, vector<8x256xf32>, vector<8x256xf32>, vector<8x256xf32>, vector<8x256xf32> -> vector<72x256xf32>
    %c0_64 = arith.constant 0 : index
    %c0_65 = arith.constant 0 : index
    %200 = vector.load %arg4[%c0_64, %c0_65] : memref<8x72xf32, #tpu.memory_space<vmem>>, vector<8x72xf32>
    %cst_66 = arith.constant dense<0.000000e+00> : vector<8x256xf32>
    %201 = tpu.matmul %200, %199, %cst_66 {dimension_numbers = #tpu.dot_dimension_numbers<[1], [0], [0], [1], [0, 0, 1, 1], [], []>, precision = #tpu.contract_precision<fp32>} : vector<8x72xf32>, vector<72x256xf32>, vector<8x256xf32> -> vector<8x256xf32>
    %c0_67 = arith.constant 0 : index
    %c0_68 = arith.constant 0 : index
    %202 = vector.load %arg5[%c0_67, %c0_68] : memref<8x1xf32, #tpu.memory_space<vmem>>, vector<8x1xf32>
    %203 = vector.broadcast %202 : vector<8x1xf32> to vector<8x256xf32>
    %204 = arith.addf %201, %203 : vector<8x256xf32>
    %cst_69 = arith.constant 0.000000e+00 : f32
    %205 = vector.broadcast %cst_69 : f32 to vector<8x256xf32>
    %206 = arith.maximumf %204, %205 : vector<8x256xf32>
    %207 = arith.addf %206, %0 : vector<8x256xf32>
    %cst_70 = arith.constant 0.000000e+00 : f32
    %208 = vector.broadcast %cst_70 : f32 to vector<8x256xf32>
    %209 = arith.maximumf %207, %208 : vector<8x256xf32>
    %c0_71 = arith.constant 0 : index
    %c0_72 = arith.constant 0 : index
    %210 = vector.load %arg6[%c0_71, %c0_72] : memref<8x256xf32, #tpu.memory_space<vmem>>, vector<8x256xf32>
    tpu.vector_store %arg6[%c0_71, %c0_72], %209 {strides = array<i32>} : memref<8x256xf32, #tpu.memory_space<vmem>>, vector<8x256xf32>,
    return
  }
  func.func @transform_0(%arg0: i32) -> (i32, i32) {
    %c0_i32 = arith.constant 0 : i32
    %c0_i32_0 = arith.constant 0 : i32
    %c0_i32_1 = arith.constant 0 : i32
    return %c0_i32, %c0_i32_0 : i32, i32
  }
  func.func @transform_1(%arg0: i32) -> (i32, i32) {
    %c0_i32 = arith.constant 0 : i32
    %c0_i32_0 = arith.constant 0 : i32
    %c0_i32_1 = arith.constant 0 : i32
    return %c0_i32, %c0_i32_0 : i32, i32
  }
  func.func @transform_2(%arg0: i32) -> (i32, i32) {
    %c0_i32 = arith.constant 0 : i32
    %c0_i32_0 = arith.constant 0 : i32
    %c0_i32_1 = arith.constant 0 : i32
    return %c0_i32, %c0_i32_0 : i32, i32
  }
  func.func @transform_3(%arg0: i32) -> (i32, i32) {
    %c0_i32 = arith.constant 0 : i32
    %c0_i32_0 = arith.constant 0 : i32
    %c0_i32_1 = arith.constant 0 : i32
    return %c0_i32, %c0_i32_0 : i32, i32
  }
  func.func @transform_4(%arg0: i32) -> (i32, i32) {
    %c0_i32 = arith.constant 0 : i32
    %c0_i32_0 = arith.constant 0 : i32
    %c0_i32_1 = arith.constant 0 : i32
    return %c0_i32, %c0_i32_0 : i32, i32
  }
  func.func @transform_5(%arg0: i32) -> (i32, i32) {
    %c0_i32 = arith.constant 0 : i32
    %c0_i32_0 = arith.constant 0 : i32
    %c0_i32_1 = arith.constant 0 : i32
    return %c0_i32, %c0_i32_0 : i32, i32
  }
}

</mosaic_0001>

<llo_original>
// kernel: tile.10
$region0: #{tile.10}
  #allocation0 [shape = 's32[1]{0}', space=sflag, size = 0x4, scoped, tag = 'scoped memory for tile.10']
  %s0 = inlined_call_operand.vmem [shape: f32[4], index: 0, kind: input, shape index: {}]
  %s1 = inlined_call_operand.vmem [shape: f32[2,1,1,4], index: 1, kind: output, shape index: {}]
  // Predicated region
  $region2: #{tile.10} parent=0 // pred_check
    _
  $region3: #{tile.10} parent=0 // pred_check_branch
    %3 = sbr.rel (0) target = $region5
  $region4: #{tile.10} parent=0 // pred_region
    _
  $region5: #{tile.10} parent=0 // pred_fallthru
    _
  %v4 = vld [vmem:[%s0] ss:$0 sm:$0xff]
  %5 = vst [vmem:[%s1] sm:$0x3] %v4

// kernel: tile.0
$region0: #{tile.0}
  %s0 = inlined_call_operand.vmem [shape: f32[2,1,1,4], index: 0, kind: input, shape index: {}]
  %s1 = inlined_call_operand.vmem [shape: f32[8,1], index: 1, kind: output, shape index: {}]
  $region1: #{tile.0} parent=0
    #allocation0 [shape = 'u8[4096]{0}', space=vmem, size = 0x1000, scoped, tag = 'scoped mem for input reshape']
    %s3 = sshllo.u32 0, 2
    %v4 = vld [vmem:[%s0] sm:%s3]
    %5 = vst [vmem:[#allocation0] sm:%s3] %v4
    %v6 = vld [vmem:[#allocation0] sm:$0x3]
    %vm7 = vcmask 7168
    %8 = vst.msk [vmem:[%s1] ss:$4 sm:$0x3] %vm7, %v6
    %v9 = vld [vmem:[#allocation0] sm:$0x3]
    %10 = vrot.lane.b32.xlu0 %v9, 127
    %v11 = vpop.permute.xlu0 %10
    %vm12 = vcmask 7168
    %s13 = scalar_lea.vmem %s1, 1
    %14 = vst.msk [vmem:[%s13] ss:$4 sm:$0x3] %vm12, %v11
    %v15 = vld [vmem:[#allocation0] sm:$0x3]
    %16 = vrot.lane.b32.xlu0 %v15, 126
    %v17 = vpop.permute.xlu0 %16
    %vm18 = vcmask 7168
    %s19 = scalar_lea.vmem %s1, 2
    %20 = vst.msk [vmem:[%s19] ss:$4 sm:$0x3] %vm18, %v17
    %v21 = vld [vmem:[#allocation0] sm:$0x3]
    %22 = vrot.lane.b32.xlu0 %v21, 125
    %v23 = vpop.permute.xlu0 %22
    %vm24 = vcmask 7168
    %s25 = scalar_lea.vmem %s1, 3
    %26 = vst.msk [vmem:[%s25] ss:$4 sm:$0x3] %vm24, %v23

// kernel: resnet_block_forward.1
$region0: #{resnet_block_forward.1}
  #allocation0 [shape = 'u32[]', space=smem, size = 0x4, offset = 0x4, fixed_abs, tag = 'smem constant byte address 0x4 - core index']
  #allocation1 [shape = 'u32[144,128]{1,0:T(1,128)}', space=vmem, size = 0x12000, scoped, tag = 'internal scratch']
  %s0 = inlined_call_operand.vmem [shape: f32[8,256], index: 0, kind: input, shape index: {}]
  %s1 = inlined_call_operand.vmem [shape: f32[8,72], index: 1, kind: input, shape index: {}]
  %s2 = inlined_call_operand.vmem [shape: f32[8,1], index: 2, kind: input, shape index: {}]
  %s3 = inlined_call_operand.vmem [shape: f32[8,72], index: 3, kind: input, shape index: {}]
  %s4 = inlined_call_operand.vmem [shape: f32[8,1], index: 4, kind: input, shape index: {}]
  %s5 = inlined_call_operand.vmem [shape: f32[8,256], index: 5, kind: output, shape index: {}]
  %s6 = sld [smem:[#allocation0]]
  $region30: #{resnet_block_forward.1} parent=0
    _
  %s8 = ssub.s32 1, %s6
  %s9 = scalar_select 0, %s8, %s6
  // Predicated region
  $region2: #{resnet_block_forward.1} parent=0 // pred_check
    _
  $region3: #{resnet_block_forward.1} parent=0 // pred_check_branch
    %11 = sbr.rel (0) target = $region5
  $region4: #{resnet_block_forward.1} parent=0 // pred_region
    _
  $region5: #{resnet_block_forward.1} parent=0 // pred_fallthru
    _
  // Predicated region
  $region6: #{resnet_block_forward.1} parent=0 // pred_check
    _
  $region7: #{resnet_block_forward.1} parent=0 // pred_check_branch
    %13 = sbr.rel (0) target = $region9
  $region8: #{resnet_block_forward.1} parent=0 // pred_region
    _
  $region9: #{resnet_block_forward.1} parent=0 // pred_fallthru
    _
  // Predicated region
  $region10: #{resnet_block_forward.1} parent=0 // pred_check
    _
  $region11: #{resnet_block_forward.1} parent=0 // pred_check_branch
    %15 = sbr.rel (0) target = $region13
  $region12: #{resnet_block_forward.1} parent=0 // pred_region
    _
  $region13: #{resnet_block_forward.1} parent=0 // pred_fallthru
    _
  // Predicated region
  $region14: #{resnet_block_forward.1} parent=0 // pred_check
    _
  $region15: #{resnet_block_forward.1} parent=0 // pred_check_branch
    %17 = sbr.rel (0) target = $region17
  $region16: #{resnet_block_forward.1} parent=0 // pred_region
    _
  $region17: #{resnet_block_forward.1} parent=0 // pred_fallthru
    _
  // Predicated region
  $region18: #{resnet_block_forward.1} parent=0 // pred_check
    _
  $region19: #{resnet_block_forward.1} parent=0 // pred_check_branch
    %19 = sbr.rel (0) target = $region21
  $region20: #{resnet_block_forward.1} parent=0 // pred_region
    _
  $region21: #{resnet_block_forward.1} parent=0 // pred_fallthru
    _
  %v20 = vld [vmem:[%s0] sm:$0xff]
  %v21 = vld [vmem:[%s0 + $0x8] sm:$0xff]
  %v22 = vlaneseq
  %v23 = vand.u32 %v22, 127
  %v24 = vadd.s32 %v23, 128
  %v25 = vand.u32 %v23, 15
  %v26 = vand.u32 %v24, 15
  %vm27 = vcmp.ge.s32.totalorder %v23, 16
  %vm28 = vcmp.ge.s32.totalorder %v24, 16
  %vm29 = vcmp.lt.s32.totalorder %v23, 272
  %vm30 = vcmp.lt.s32.totalorder %v24, 272
  %vm31 = vmand %vm27, %vm29
  %vm32 = vmand %vm28, %vm30
  %vm33 = vcmp.ge.s32.totalorder %v25, 1
  %vm34 = vcmp.ge.s32.totalorder %v26, 1
  %vm35 = vcmp.lt.s32.totalorder %v25, 17
  %vm36 = vcmp.lt.s32.totalorder %v26, 17
  %vm37 = vmand %vm33, %vm35
  %vm38 = vmand %vm34, %vm36
  %vm39 = vmand %vm31, %vm37
  %vm40 = vmand %vm32, %vm38
  %vm41 = vcmp.ge.s32.totalorder %v25, 0
  %vm42 = vcmp.ge.s32.totalorder %v26, 0
  %vm43 = vcmp.lt.s32.totalorder %v25, 16
  %vm44 = vcmp.lt.s32.totalorder %v26, 16
  %vm45 = vmand %vm41, %vm43
  %vm46 = vmand %vm42, %vm44
  %vm47 = vmand %vm31, %vm45
  %vm48 = vmand %vm32, %vm46
  %vm49 = vcmp.ge.s32.totalorder %v25, 4294967295
  %vm50 = vcmp.ge.s32.totalorder %v26, 4294967295
  %vm51 = vcmp.lt.s32.totalorder %v25, 15
  %vm52 = vcmp.lt.s32.totalorder %v26, 15
  %vm53 = vmand %vm49, %vm51
  %vm54 = vmand %vm50, %vm52
  %vm55 = vmand %vm31, %vm53
  %vm56 = vmand %vm32, %vm54
  %vm57 = vcmp.ge.s32.totalorder %v23, 0
  %vm58 = vcmp.ge.s32.totalorder %v24, 0
  %vm59 = vcmp.lt.s32.totalorder %v23, 256
  %vm60 = vcmp.lt.s32.totalorder %v24, 256
  %vm61 = vmand %vm57, %vm59
  %vm62 = vmand %vm58, %vm60
  %vm63 = vmand %vm61, %vm37
  %vm64 = vmand %vm62, %vm38
  %vm65 = vmand %vm61, %vm45
  %vm66 = vmand %vm62, %vm46
  %vm67 = vmand %vm61, %vm53
  %vm68 = vmand %vm62, %vm54
  %vm69 = vcmp.ge.s32.totalorder %v23, 4294967280
  %vm70 = vcmp.ge.s32.totalorder %v24, 4294967280
  %vm71 = vcmp.lt.s32.totalorder %v23, 240
  %vm72 = vcmp.lt.s32.totalorder %v24, 240
  %vm73 = vmand %vm69, %vm71
  %vm74 = vmand %vm70, %vm72
  %vm75 = vmand %vm73, %vm37
  %vm76 = vmand %vm74, %vm38
  %vm77 = vmand %vm73, %vm45
  %vm78 = vmand %vm74, %vm46
  %vm79 = vmand %vm73, %vm53
  %vm80 = vmand %vm74, %vm54
  %81 = vrot.lane.b32.xlu0 %v20, 17
  %v82 = vpop.permute.xlu0 %81
  %83 = vrot.lane.b32.xlu0 %v21, 17
  %v84 = vpop.permute.xlu0 %83
  %vm85 = vcmp.lt.s32.totalorder %v23, 17
  %v86 = vsel %vm85, %v82, %v84
  %v87 = vsel %vm85, %v84, %v82
  %v88 = vsel %vm39, 1, 0
  %v89 = vsel %vm40, 1, 0
  %vm90 = vcmp.eq.s32.totalorder %v88, 1
  %vm91 = vcmp.eq.s32.totalorder %v89, 1
  %v92 = vsel %vm90, %v87, 0.0
  %v93 = vsel %vm91, %v86, 0.0
  %94 = vrot.lane.b32.xlu0 %v20, 16
  %v95 = vpop.permute.xlu0 %94
  %96 = vrot.lane.b32.xlu0 %v21, 16
  %v97 = vpop.permute.xlu0 %96
  %vm98 = vcmp.lt.s32.totalorder %v23, 16
  %v99 = vsel %vm98, %v95, %v97
  %v100 = vsel %vm98, %v97, %v95
  %v101 = vsel %vm47, 1, 0
  %v102 = vsel %vm48, 1, 0
  %vm103 = vcmp.eq.s32.totalorder %v101, 1
  %vm104 = vcmp.eq.s32.totalorder %v102, 1
  %v105 = vsel %vm103, %v100, 0.0
  %v106 = vsel %vm104, %v99, 0.0
  %107 = vrot.lane.b32.xlu0 %v20, 15
  %v108 = vpop.permute.xlu0 %107
  %109 = vrot.lane.b32.xlu0 %v21, 15
  %v110 = vpop.permute.xlu0 %109
  %vm111 = vcmp.lt.s32.totalorder %v23, 15
  %v112 = vsel %vm111, %v108, %v110
  %v113 = vsel %vm111, %v110, %v108
  %v114 = vsel %vm55, 1, 0
  %v115 = vsel %vm56, 1, 0
  %vm116 = vcmp.eq.s32.totalorder %v114, 1
  %vm117 = vcmp.eq.s32.totalorder %v115, 1
  %v118 = vsel %vm116, %v113, 0.0
  %v119 = vsel %vm117, %v112, 0.0
  %120 = vrot.lane.b32.xlu0 %v20, 1
  %v121 = vpop.permute.xlu0 %120
  %122 = vrot.lane.b32.xlu0 %v21, 1
  %v123 = vpop.permute.xlu0 %122
  %vm124 = vcmp.lt.s32.totalorder %v23, 1
  %v125 = vsel %vm124, %v121, %v123
  %v126 = vsel %vm124, %v123, %v121
  %v127 = vsel %vm63, 1, 0
  %v128 = vsel %vm64, 1, 0
  %vm129 = vcmp.eq.s32.totalorder %v127, 1
  %vm130 = vcmp.eq.s32.totalorder %v128, 1
  %v131 = vsel %vm129, %v126, 0.0
  %v132 = vsel %vm130, %v125, 0.0
  %v133 = vsel %vm65, 1, 0
  %v134 = vsel %vm66, 1, 0
  %vm135 = vcmp.eq.s32.totalorder %v133, 1
  %vm136 = vcmp.eq.s32.totalorder %v134, 1
  %v137 = vsel %vm135, %v20, 0.0
  %v138 = vsel %vm136, %v21, 0.0
  %139 = vrot.lane.b32.xlu0 %v20, 127
  %v140 = vpop.permute.xlu0 %139
  %141 = vrot.lane.b32.xlu0 %v21, 127
  %v142 = vpop.permute.xlu0 %141
  %vm143 = vcmp.lt.s32.totalorder %v23, 127
  %v144 = vsel %vm143, %v140, %v142
  %v145 = vsel %vm143, %v142, %v140
  %v146 = vsel %vm67, 1, 0
  %v147 = vsel %vm68, 1, 0
  %vm148 = vcmp.eq.s32.totalorder %v146, 1
  %vm149 = vcmp.eq.s32.totalorder %v147, 1
  %v150 = vsel %vm148, %v144, 0.0
  %v151 = vsel %vm149, %v145, 0.0
  %152 = vrot.lane.b32.xlu0 %v20, 113
  %v153 = vpop.permute.xlu0 %152
  %154 = vrot.lane.b32.xlu0 %v21, 113
  %v155 = vpop.permute.xlu0 %154
  %vm156 = vcmp.lt.s32.totalorder %v23, 113
  %v157 = vsel %vm156, %v153, %v155
  %v158 = vsel %vm156, %v155, %v153
  %v159 = vsel %vm75, 1, 0
  %v160 = vsel %vm76, 1, 0
  %vm161 = vcmp.eq.s32.totalorder %v159, 1
  %vm162 = vcmp.eq.s32.totalorder %v160, 1
  %v163 = vsel %vm161, %v157, 0.0
  %v164 = vsel %vm162, %v158, 0.0
  %165 = vrot.lane.b32.xlu0 %v20, 112
  %v166 = vpop.permute.xlu0 %165
  %167 = vrot.lane.b32.xlu0 %v21, 112
  %v168 = vpop.permute.xlu0 %167
  %vm169 = vcmp.lt.s32.totalorder %v23, 112
  %v170 = vsel %vm169, %v166, %v168
  %v171 = vsel %vm169, %v168, %v166
  %v172 = vsel %vm77, 1, 0
  %v173 = vsel %vm78, 1, 0
  %vm174 = vcmp.eq.s32.totalorder %v172, 1
  %vm175 = vcmp.eq.s32.totalorder %v173, 1
  %v176 = vsel %vm174, %v170, 0.0
  %v177 = vsel %vm175, %v171, 0.0
  %178 = vrot.lane.b32.xlu0 %v20, 111
  %v179 = vpop.permute.xlu0 %178
  %180 = vrot.lane.b32.xlu0 %v21, 111
  %v181 = vpop.permute.xlu0 %180
  %vm182 = vcmp.lt.s32.totalorder %v23, 111
  %v183 = vsel %vm182, %v179, %v181
  %v184 = vsel %vm182, %v181, %v179
  %v185 = vsel %vm79, 1, 0
  %v186 = vsel %vm80, 1, 0
  %vm187 = vcmp.eq.s32.totalorder %v185, 1
  %vm188 = vcmp.eq.s32.totalorder %v186, 1
  %v189 = vsel %vm187, %v183, 0.0
  %v190 = vsel %vm188, %v184, 0.0
  %v191 = vld [vmem:[%s1] sm:$0xff]
  %v192 = vld [vmem:[%s2] sm:$0xff]
  %194 = vset.pattern.permute.xlu0 0
  %195 = vperm.xlu0 %194, %v192
  %v196 = vpop.permute.xlu0 %195
  %vm198 = vcmask 588800
  %v200 = vsel %vm198, %v191, 0
  %v202 = vand.u32 %v93, 4294901760
  %203 = vmatprep.subr.mxu0 %v202
  %v204 = vand.u32 %v92, 4294901760
  %205 = vmatpush1.msra.mxu0 %v204
  %v206 = vand.u32 %v106, 4294901760
  %207 = vmatprep.subr.mxu0 %v206
  %v208 = vand.u32 %v105, 4294901760
  %209 = vmatpush1.msra.mxu0 %v208
  %v210 = vand.u32 %v119, 4294901760
  %211 = vmatprep.subr.mxu0 %v210
  %v212 = vand.u32 %v118, 4294901760
  %213 = vmatpush1.msra.mxu0 %v212
  %v214 = vand.u32 %v132, 4294901760
  %215 = vmatprep.subr.mxu0 %v214
  %v216 = vand.u32 %v131, 4294901760
  %217 = vmatpush1.msra.mxu0 %v216
  %v218 = vand.u32 %v138, 4294901760
  %219 = vmatprep.subr.mxu0 %v218
  %v220 = vand.u32 %v137, 4294901760
  %221 = vmatpush1.msra.mxu0 %v220
  %v222 = vand.u32 %v151, 4294901760
  %223 = vmatprep.subr.mxu0 %v222
  %v224 = vand.u32 %v150, 4294901760
  %225 = vmatpush1.msra.mxu0 %v224
  %v226 = vand.u32 %v164, 4294901760
  %227 = vmatprep.subr.mxu0 %v226
  %v228 = vand.u32 %v163, 4294901760
  %229 = vmatpush1.msra.mxu0 %v228
  %v230 = vand.u32 %v177, 4294901760
  %231 = vmatprep.subr.mxu0 %v230
  %v232 = vand.u32 %v176, 4294901760
  %233 = vmatpush1.msra.mxu0 %v232
  %v234 = vand.u32 %v190, 4294901760
  %235 = vmatprep.subr.mxu0 %v234
  %v236 = vand.u32 %v189, 4294901760
  %237 = vmatpush1.msra.mxu0 %v236
  %238 = vmatprep.subr.mxu0 0.0
  %239 = vmatpush1.msra.mxu0 0.0
  %240 = vmatprep.subr.mxu0 0.0
  %241 = vmatpush1.msra.mxu0 0.0
  %242 = vmatprep.subr.mxu0 0.0
  %243 = vmatpush1.msra.mxu0 0.0
  %244 = vmatprep.subr.mxu0 0.0
  %245 = vmatpush1.msra.mxu0 0.0
  %246 = vmatprep.subr.mxu0 0.0
  %247 = vmatpush1.msra.mxu0 0.0
  %248 = vmatprep.subr.mxu0 0.0
  %249 = vmatpush1.msra.mxu0 0.0
  %250 = vmatprep.subr.mxu0 0.0
  %251 = vmatpush1.msra.mxu0 0.0
  %252 = vmatprep.subr.mxu0 0.0
  %253 = vmatpush1.msra.mxu0 0.0
  %254 = vmatprep.subr.mxu0 0.0
  %255 = vmatpush1.msra.mxu0 0.0
  %256 = vmatprep.subr.mxu0 0.0
  %257 = vmatpush1.msra.mxu0 0.0
  %258 = vmatprep.subr.mxu0 0.0
  %259 = vmatpush1.msra.mxu0 0.0
  %260 = vmatprep.subr.mxu0 0.0
  %261 = vmatpush1.msra.mxu0 0.0
  %262 = vmatprep.subr.mxu0 0.0
  %263 = vmatpush1.msra.mxu0 0.0
  %264 = vmatprep.subr.mxu0 0.0
  %265 = vmatpush1.msra.mxu0 0.0
  %266 = vmatprep.subr.mxu0 0.0
  %267 = vmatpush1.msra.mxu0 0.0
  %268 = vmatprep.subr.mxu0 0.0
  %269 = vmatpush1.msra.mxu0 0.0
  %270 = vmatprep.subr.mxu0 0.0
  %271 = vmatpush1.msra.mxu0 0.0
  %272 = vmatprep.subr.mxu0 0.0
  %273 = vmatpush1.msra.mxu0 0.0
  %274 = vmatprep.subr.mxu0 0.0
  %275 = vmatpush1.msra.mxu0 0.0
  %276 = vmatprep.subr.mxu0 0.0
  %277 = vmatpush1.msra.mxu0 0.0
  %278 = vmatprep.subr.mxu0 0.0
  %279 = vmatpush1.msra.mxu0 0.0
  %280 = vmatprep.subr.mxu0 0.0
  %281 = vmatpush1.msra.mxu0 0.0
  %282 = vmatprep.subr.mxu0 0.0
  %283 = vmatpush1.msra.mxu0 0.0
  %284 = vmatprep.mubr.f32.mxu0 0.0
  %v285 = vand.u32 %v200, 4294901760
  %v286 = vsub.f32 %v200, %v285
  %v287 = vand.u32 %v286, 4294901760
  %v288 = vsub.f32 %v286, %v287
  %v289 = vand.u32 %v288, 4294901760
  %290 = vmatmul.mubr.f32.gmra.mrb[0].mxu0 %v289
  %v291 = vpop.f32.mrb[0].mxu0
  %v292 = vadd.f32 %v196, %v291
  %v293 = vpop.f32.mrb[0].mxu0
  %v294 = vadd.f32 %v196, %v293
  %295 = vdwg.mxu0
  %v296 = vand.u32 %v93, 4294901760
  %v297 = vsub.f32 %v93, %v296
  %v298 = vand.u32 %v297, 4294901760
  %v299 = vsub.f32 %v297, %v298
  %v300 = vand.u32 %v299, 4294901760
  %301 = vmatprep.subr.mxu0 %v300
  %v302 = vand.u32 %v92, 4294901760
  %v303 = vsub.f32 %v92, %v302
  %v304 = vand.u32 %v303, 4294901760
  %v305 = vsub.f32 %v303, %v304
  %v306 = vand.u32 %v305, 4294901760
  %307 = vmatpush1.msra.mxu0 %v306
  %v308 = vand.u32 %v106, 4294901760
  %v309 = vsub.f32 %v106, %v308
  %v310 = vand.u32 %v309, 4294901760
  %v311 = vsub.f32 %v309, %v310
  %v312 = vand.u32 %v311, 4294901760
  %313 = vmatprep.subr.mxu0 %v312
  %v314 = vand.u32 %v105, 4294901760
  %v315 = vsub.f32 %v105, %v314
  %v316 = vand.u32 %v315, 4294901760
  %v317 = vsub.f32 %v315, %v316
  %v318 = vand.u32 %v317, 4294901760
  %319 = vmatpush1.msra.mxu0 %v318
  %v320 = vand.u32 %v119, 4294901760
  %v321 = vsub.f32 %v119, %v320
  %v322 = vand.u32 %v321, 4294901760
  %v323 = vsub.f32 %v321, %v322
  %v324 = vand.u32 %v323, 4294901760
  %325 = vmatprep.subr.mxu0 %v324
  %v326 = vand.u32 %v118, 4294901760
  %v327 = vsub.f32 %v118, %v326
  %v328 = vand.u32 %v327, 4294901760
  %v329 = vsub.f32 %v327, %v328
  %v330 = vand.u32 %v329, 4294901760
  %331 = vmatpush1.msra.mxu0 %v330
  %v332 = vand.u32 %v132, 4294901760
  %v333 = vsub.f32 %v132, %v332
  %v334 = vand.u32 %v333, 4294901760
  %v335 = vsub.f32 %v333, %v334
  %v336 = vand.u32 %v335, 4294901760
  %337 = vmatprep.subr.mxu0 %v336
  %v338 = vand.u32 %v131, 4294901760
  %v339 = vsub.f32 %v131, %v338
  %v340 = vand.u32 %v339, 4294901760
  %v341 = vsub.f32 %v339, %v340
  %v342 = vand.u32 %v341, 4294901760
  %343 = vmatpush1.msra.mxu0 %v342
  %v344 = vand.u32 %v138, 4294901760
  %v345 = vsub.f32 %v138, %v344
  %v346 = vand.u32 %v345, 4294901760
  %v347 = vsub.f32 %v345, %v346
  %v348 = vand.u32 %v347, 4294901760
  %349 = vmatprep.subr.mxu0 %v348
  %v350 = vand.u32 %v137, 4294901760
  %v351 = vsub.f32 %v137, %v350
  %v352 = vand.u32 %v351, 4294901760
  %v353 = vsub.f32 %v351, %v352
  %v354 = vand.u32 %v353, 4294901760
  %355 = vmatpush1.msra.mxu0 %v354
  %v356 = vand.u32 %v151, 4294901760
  %v357 = vsub.f32 %v151, %v356
  %v358 = vand.u32 %v357, 4294901760
  %v359 = vsub.f32 %v357, %v358
  %v360 = vand.u32 %v359, 4294901760
  %361 = vmatprep.subr.mxu0 %v360
  %v362 = vand.u32 %v150, 4294901760
  %v363 = vsub.f32 %v150, %v362
  %v364 = vand.u32 %v363, 4294901760
  %v365 = vsub.f32 %v363, %v364
  %v366 = vand.u32 %v365, 4294901760
  %367 = vmatpush1.msra.mxu0 %v366
  %v368 = vand.u32 %v164, 4294901760
  %v369 = vsub.f32 %v164, %v368
  %v370 = vand.u32 %v369, 4294901760
  %v371 = vsub.f32 %v369, %v370
  %v372 = vand.u32 %v371, 4294901760
  %373 = vmatprep.subr.mxu0 %v372
  %v374 = vand.u32 %v163, 4294901760
  %v375 = vsub.f32 %v163, %v374
  %v376 = vand.u32 %v375, 4294901760
  %v377 = vsub.f32 %v375, %v376
  %v378 = vand.u32 %v377, 4294901760
  %379 = vmatpush1.msra.mxu0 %v378
  %v380 = vand.u32 %v177, 4294901760
  %v381 = vsub.f32 %v177, %v380
  %v382 = vand.u32 %v381, 4294901760
  %v383 = vsub.f32 %v381, %v382
  %v384 = vand.u32 %v383, 4294901760
  %385 = vmatprep.subr.mxu0 %v384
  %v386 = vand.u32 %v176, 4294901760
  %v387 = vsub.f32 %v176, %v386
  %v388 = vand.u32 %v387, 4294901760
  %v389 = vsub.f32 %v387, %v388
  %v390 = vand.u32 %v389, 4294901760
  %391 = vmatpush1.msra.mxu0 %v390
  %v392 = vand.u32 %v190, 4294901760
  %v393 = vsub.f32 %v190, %v392
  %v394 = vand.u32 %v393, 4294901760
  %v395 = vsub.f32 %v393, %v394
  %v396 = vand.u32 %v395, 4294901760
  %397 = vmatprep.subr.mxu0 %v396
  %v398 = vand.u32 %v189, 4294901760
  %v399 = vsub.f32 %v189, %v398
  %v400 = vand.u32 %v399, 4294901760
  %v401 = vsub.f32 %v399, %v400
  %v402 = vand.u32 %v401, 4294901760
  %403 = vmatpush1.msra.mxu0 %v402
  %404 = vmatprep.subr.mxu0 0.0
  %405 = vmatpush1.msra.mxu0 0.0
  %406 = vmatprep.subr.mxu0 0.0
  %407 = vmatpush1.msra.mxu0 0.0
  %408 = vmatprep.subr.mxu0 0.0
  %409 = vmatpush1.msra.mxu0 0.0
  %410 = vmatprep.subr.mxu0 0.0
  %411 = vmatpush1.msra.mxu0 0.0
  %412 = vmatprep.subr.mxu0 0.0
  %413 = vmatpush1.msra.mxu0 0.0
  %414 = vmatprep.subr.mxu0 0.0
  %415 = vmatpush1.msra.mxu0 0.0
  %416 = vmatprep.subr.mxu0 0.0
  %417 = vmatpush1.msra.mxu0 0.0
  %418 = vmatprep.subr.mxu0 0.0
  %419 = vmatpush1.msra.mxu0 0.0
  %420 = vmatprep.subr.mxu0 0.0
  %421 = vmatpush1.msra.mxu0 0.0
  %422 = vmatprep.subr.mxu0 0.0
  %423 = vmatpush1.msra.mxu0 0.0
  %424 = vmatprep.subr.mxu0 0.0
  %425 = vmatpush1.msra.mxu0 0.0
  %426 = vmatprep.subr.mxu0 0.0
  %427 = vmatpush1.msra.mxu0 0.0
  %428 = vmatprep.subr.mxu0 0.0
  %429 = vmatpush1.msra.mxu0 0.0
  %430 = vmatprep.subr.mxu0 0.0
  %431 = vmatpush1.msra.mxu0 0.0
  %432 = vmatprep.subr.mxu0 0.0
  %433 = vmatpush1.msra.mxu0 0.0
  %434 = vmatprep.subr.mxu0 0.0
  %435 = vmatpush1.msra.mxu0 0.0
  %436 = vmatprep.subr.mxu0 0.0
  %437 = vmatpush1.msra.mxu0 0.0
  %438 = vmatprep.subr.mxu0 0.0
  %439 = vmatpush1.msra.mxu0 0.0
  %440 = vmatprep.subr.mxu0 0.0
  %441 = vmatpush1.msra.mxu0 0.0
  %442 = vmatprep.subr.mxu0 0.0
  %443 = vmatpush1.msra.mxu0 0.0
  %444 = vmatprep.subr.mxu0 0.0
  %445 = vmatpush1.msra.mxu0 0.0
  %446 = vmatprep.subr.mxu0 0.0
  %447 = vmatpush1.msra.mxu0 0.0
  %448 = vmatprep.subr.mxu0 0.0
  %449 = vmatpush1.msra.mxu0 0.0
  %450 = vmatprep.mubr.f32.mxu0 0.0
  %v451 = vand.u32 %v200, 4294901760
  %452 = vmatmul.mubr.f32.gmra.mrb[0].mxu0 %v451
  %v453 = vpop.f32.mrb[0].mxu0
  %v454 = vadd.f32 %v292, %v453
  %v455 = vpop.f32.mrb[0].mxu0
  %v456 = vadd.f32 %v294, %v455
  %457 = vdwg.mxu0
  %v458 = vand.u32 %v93, 4294901760
  %v459 = vsub.f32 %v93, %v458
  %460 = vmatprep.subr.mxu0 %v459
  %v461 = vand.u32 %v92, 4294901760
  %v462 = vsub.f32 %v92, %v461
  %463 = vmatpush1.msra.mxu0 %v462
  %v464 = vand.u32 %v106, 4294901760
  %v465 = vsub.f32 %v106, %v464
  %466 = vmatprep.subr.mxu0 %v465
  %v467 = vand.u32 %v105, 4294901760
  %v468 = vsub.f32 %v105, %v467
  %469 = vmatpush1.msra.mxu0 %v468
  %v470 = vand.u32 %v119, 4294901760
  %v471 = vsub.f32 %v119, %v470
  %472 = vmatprep.subr.mxu0 %v471
  %v473 = vand.u32 %v118, 4294901760
  %v474 = vsub.f32 %v118, %v473
  %475 = vmatpush1.msra.mxu0 %v474
  %v476 = vand.u32 %v132, 4294901760
  %v477 = vsub.f32 %v132, %v476
  %478 = vmatprep.subr.mxu0 %v477
  %v479 = vand.u32 %v131, 4294901760
  %v480 = vsub.f32 %v131, %v479
  %481 = vmatpush1.msra.mxu0 %v480
  %v482 = vand.u32 %v138, 4294901760
  %v483 = vsub.f32 %v138, %v482
  %484 = vmatprep.subr.mxu0 %v483
  %v485 = vand.u32 %v137, 4294901760
  %v486 = vsub.f32 %v137, %v485
  %487 = vmatpush1.msra.mxu0 %v486
  %v488 = vand.u32 %v151, 4294901760
  %v489 = vsub.f32 %v151, %v488
  %490 = vmatprep.subr.mxu0 %v489
  %v491 = vand.u32 %v150, 4294901760
  %v492 = vsub.f32 %v150, %v491
  %493 = vmatpush1.msra.mxu0 %v492
  %v494 = vand.u32 %v164, 4294901760
  %v495 = vsub.f32 %v164, %v494
  %496 = vmatprep.subr.mxu0 %v495
  %v497 = vand.u32 %v163, 4294901760
  %v498 = vsub.f32 %v163, %v497
  %499 = vmatpush1.msra.mxu0 %v498
  %v500 = vand.u32 %v177, 4294901760
  %v501 = vsub.f32 %v177, %v500
  %502 = vmatprep.subr.mxu0 %v501
  %v503 = vand.u32 %v176, 4294901760
  %v504 = vsub.f32 %v176, %v503
  %505 = vmatpush1.msra.mxu0 %v504
  %v506 = vand.u32 %v190, 4294901760
  %v507 = vsub.f32 %v190, %v506
  %508 = vmatprep.subr.mxu0 %v507
  %v509 = vand.u32 %v189, 4294901760
  %v510 = vsub.f32 %v189, %v509
  %511 = vmatpush1.msra.mxu0 %v510
  %512 = vmatprep.subr.mxu0 0.0
  %513 = vmatpush1.msra.mxu0 0.0
  %514 = vmatprep.subr.mxu0 0.0
  %515 = vmatpush1.msra.mxu0 0.0
  %516 = vmatprep.subr.mxu0 0.0
  %517 = vmatpush1.msra.mxu0 0.0
  %518 = vmatprep.subr.mxu0 0.0
  %519 = vmatpush1.msra.mxu0 0.0
  %520 = vmatprep.subr.mxu0 0.0
  %521 = vmatpush1.msra.mxu0 0.0
  %522 = vmatprep.subr.mxu0 0.0
  %523 = vmatpush1.msra.mxu0 0.0
  %524 = vmatprep.subr.mxu0 0.0
  %525 = vmatpush1.msra.mxu0 0.0
  %526 = vmatprep.subr.mxu0 0.0
  %527 = vmatpush1.msra.mxu0 0.0
  %528 = vmatprep.subr.mxu0 0.0
  %529 = vmatpush1.msra.mxu0 0.0
  %530 = vmatprep.subr.mxu0 0.0
  %531 = vmatpush1.msra.mxu0 0.0
  %532 = vmatprep.subr.mxu0 0.0
  %533 = vmatpush1.msra.mxu0 0.0
  %534 = vmatprep.subr.mxu0 0.0
  %535 = vmatpush1.msra.mxu0 0.0
  %536 = vmatprep.subr.mxu0 0.0
  %537 = vmatpush1.msra.mxu0 0.0
  %538 = vmatprep.subr.mxu0 0.0
  %539 = vmatpush1.msra.mxu0 0.0
  %540 = vmatprep.subr.mxu0 0.0
  %541 = vmatpush1.msra.mxu0 0.0
  %542 = vmatprep.subr.mxu0 0.0
  %543 = vmatpush1.msra.mxu0 0.0
  %544 = vmatprep.subr.mxu0 0.0
  %545 = vmatpush1.msra.mxu0 0.0
  %546 = vmatprep.subr.mxu0 0.0
  %547 = vmatpush1.msra.mxu0 0.0
  %548 = vmatprep.subr.mxu0 0.0
  %549 = vmatpush1.msra.mxu0 0.0
  %550 = vmatprep.subr.mxu0 0.0
  %551 = vmatpush1.msra.mxu0 0.0
  %552 = vmatprep.subr.mxu0 0.0
  %553 = vmatpush1.msra.mxu0 0.0
  %554 = vmatprep.subr.mxu0 0.0
  %555 = vmatpush1.msra.mxu0 0.0
  %556 = vmatprep.subr.mxu0 0.0
  %557 = vmatpush1.msra.mxu0 0.0
  %558 = vmatprep.mubr.f32.mxu0 0.0
  %v559 = vand.u32 %v200, 4294901760
  %v560 = vsub.f32 %v200, %v559
  %561 = vmatmul.mubr.f32.gmra.mrb[0].mxu0 %v560
  %v562 = vpop.f32.mrb[0].mxu0
  %v563 = vadd.f32 %v454, %v562
  %v564 = vpop.f32.mrb[0].mxu0
  %v565 = vadd.f32 %v456, %v564
  %566 = vdwg.mxu0
  %v567 = vand.u32 %v93, 4294901760
  %568 = vmatprep.subr.mxu0 %v567
  %v569 = vand.u32 %v92, 4294901760
  %570 = vmatpush1.msra.mxu0 %v569
  %v571 = vand.u32 %v106, 4294901760
  %572 = vmatprep.subr.mxu0 %v571
  %v573 = vand.u32 %v105, 4294901760
  %574 = vmatpush1.msra.mxu0 %v573
  %v575 = vand.u32 %v119, 4294901760
  %576 = vmatprep.subr.mxu0 %v575
  %v577 = vand.u32 %v118, 4294901760
  %578 = vmatpush1.msra.mxu0 %v577
  %v579 = vand.u32 %v132, 4294901760
  %580 = vmatprep.subr.mxu0 %v579
  %v581 = vand.u32 %v131, 4294901760
  %582 = vmatpush1.msra.mxu0 %v581
  %v583 = vand.u32 %v138, 4294901760
  %584 = vmatprep.subr.mxu0 %v583
  %v585 = vand.u32 %v137, 4294901760
  %586 = vmatpush1.msra.mxu0 %v585
  %v587 = vand.u32 %v151, 4294901760
  %588 = vmatprep.subr.mxu0 %v587
  %v589 = vand.u32 %v150, 4294901760
  %590 = vmatpush1.msra.mxu0 %v589
  %v591 = vand.u32 %v164, 4294901760
  %592 = vmatprep.subr.mxu0 %v591
  %v593 = vand.u32 %v163, 4294901760
  %594 = vmatpush1.msra.mxu0 %v593
  %v595 = vand.u32 %v177, 4294901760
  %596 = vmatprep.subr.mxu0 %v595
  %v597 = vand.u32 %v176, 4294901760
  %598 = vmatpush1.msra.mxu0 %v597
  %v599 = vand.u32 %v190, 4294901760
  %600 = vmatprep.subr.mxu0 %v599
  %v601 = vand.u32 %v189, 4294901760
  %602 = vmatpush1.msra.mxu0 %v601
  %603 = vmatprep.subr.mxu0 0.0
  %604 = vmatpush1.msra.mxu0 0.0
  %605 = vmatprep.subr.mxu0 0.0
  %606 = vmatpush1.msra.mxu0 0.0
  %607 = vmatprep.subr.mxu0 0.0
  %608 = vmatpush1.msra.mxu0 0.0
  %609 = vmatprep.subr.mxu0 0.0
  %610 = vmatpush1.msra.mxu0 0.0
  %611 = vmatprep.subr.mxu0 0.0
  %612 = vmatpush1.msra.mxu0 0.0
  %613 = vmatprep.subr.mxu0 0.0
  %614 = vmatpush1.msra.mxu0 0.0
  %615 = vmatprep.subr.mxu0 0.0
  %616 = vmatpush1.msra.mxu0 0.0
  %617 = vmatprep.subr.mxu0 0.0
  %618 = vmatpush1.msra.mxu0 0.0
  %619 = vmatprep.subr.mxu0 0.0
  %620 = vmatpush1.msra.mxu0 0.0
  %621 = vmatprep.subr.mxu0 0.0
  %622 = vmatpush1.msra.mxu0 0.0
  %623 = vmatprep.subr.mxu0 0.0
  %624 = vmatpush1.msra.mxu0 0.0
  %625 = vmatprep.subr.mxu0 0.0
  %626 = vmatpush1.msra.mxu0 0.0
  %627 = vmatprep.subr.mxu0 0.0
  %628 = vmatpush1.msra.mxu0 0.0
  %629 = vmatprep.subr.mxu0 0.0
  %630 = vmatpush1.msra.mxu0 0.0
  %631 = vmatprep.subr.mxu0 0.0
  %632 = vmatpush1.msra.mxu0 0.0
  %633 = vmatprep.subr.mxu0 0.0
  %634 = vmatpush1.msra.mxu0 0.0
  %635 = vmatprep.subr.mxu0 0.0
  %636 = vmatpush1.msra.mxu0 0.0
  %637 = vmatprep.subr.mxu0 0.0
  %638 = vmatpush1.msra.mxu0 0.0
  %639 = vmatprep.subr.mxu0 0.0
  %640 = vmatpush1.msra.mxu0 0.0
  %641 = vmatprep.subr.mxu0 0.0
  %642 = vmatpush1.msra.mxu0 0.0
  %643 = vmatprep.subr.mxu0 0.0
  %644 = vmatpush1.msra.mxu0 0.0
  %645 = vmatprep.subr.mxu0 0.0
  %646 = vmatpush1.msra.mxu0 0.0
  %647 = vmatprep.subr.mxu0 0.0
  %648 = vmatpush1.msra.mxu0 0.0
  %649 = vmatprep.mubr.f32.mxu0 0.0
  %v650 = vand.u32 %v200, 4294901760
  %v651 = vsub.f32 %v200, %v650
  %v652 = vand.u32 %v651, 4294901760
  %653 = vmatmul.mubr.f32.gmra.mrb[0].mxu0 %v652
  %v654 = vpop.f32.mrb[0].mxu0
  %v655 = vadd.f32 %v563, %v654
  %v656 = vpop.f32.mrb[0].mxu0
  %v657 = vadd.f32 %v565, %v656
  %658 = vdwg.mxu0
  %v659 = vand.u32 %v93, 4294901760
  %v660 = vsub.f32 %v93, %v659
  %v661 = vand.u32 %v660, 4294901760
  %662 = vmatprep.subr.mxu0 %v661
  %v663 = vand.u32 %v92, 4294901760
  %v664 = vsub.f32 %v92, %v663
  %v665 = vand.u32 %v664, 4294901760
  %666 = vmatpush1.msra.mxu0 %v665
  %v667 = vand.u32 %v106, 4294901760
  %v668 = vsub.f32 %v106, %v667
  %v669 = vand.u32 %v668, 4294901760
  %670 = vmatprep.subr.mxu0 %v669
  %v671 = vand.u32 %v105, 4294901760
  %v672 = vsub.f32 %v105, %v671
  %v673 = vand.u32 %v672, 4294901760
  %674 = vmatpush1.msra.mxu0 %v673
  %v675 = vand.u32 %v119, 4294901760
  %v676 = vsub.f32 %v119, %v675
  %v677 = vand.u32 %v676, 4294901760
  %678 = vmatprep.subr.mxu0 %v677
  %v679 = vand.u32 %v118, 4294901760
  %v680 = vsub.f32 %v118, %v679
  %v681 = vand.u32 %v680, 4294901760
  %682 = vmatpush1.msra.mxu0 %v681
  %v683 = vand.u32 %v132, 4294901760
  %v684 = vsub.f32 %v132, %v683
  %v685 = vand.u32 %v684, 4294901760
  %686 = vmatprep.subr.mxu0 %v685
  %v687 = vand.u32 %v131, 4294901760
  %v688 = vsub.f32 %v131, %v687
  %v689 = vand.u32 %v688, 4294901760
  %690 = vmatpush1.msra.mxu0 %v689
  %v691 = vand.u32 %v138, 4294901760
  %v692 = vsub.f32 %v138, %v691
  %v693 = vand.u32 %v692, 4294901760
  %694 = vmatprep.subr.mxu0 %v693
  %v695 = vand.u32 %v137, 4294901760
  %v696 = vsub.f32 %v137, %v695
  %v697 = vand.u32 %v696, 4294901760
  %698 = vmatpush1.msra.mxu0 %v697
  %v699 = vand.u32 %v151, 4294901760
  %v700 = vsub.f32 %v151, %v699
  %v701 = vand.u32 %v700, 4294901760
  %702 = vmatprep.subr.mxu0 %v701
  %v703 = vand.u32 %v150, 4294901760
  %v704 = vsub.f32 %v150, %v703
  %v705 = vand.u32 %v704, 4294901760
  %706 = vmatpush1.msra.mxu0 %v705
  %v707 = vand.u32 %v164, 4294901760
  %v708 = vsub.f32 %v164, %v707
  %v709 = vand.u32 %v708, 4294901760
  %710 = vmatprep.subr.mxu0 %v709
  %v711 = vand.u32 %v163, 4294901760
  %v712 = vsub.f32 %v163, %v711
  %v713 = vand.u32 %v712, 4294901760
  %714 = vmatpush1.msra.mxu0 %v713
  %v715 = vand.u32 %v177, 4294901760
  %v716 = vsub.f32 %v177, %v715
  %v717 = vand.u32 %v716, 4294901760
  %718 = vmatprep.subr.mxu0 %v717
  %v719 = vand.u32 %v176, 4294901760
  %v720 = vsub.f32 %v176, %v719
  %v721 = vand.u32 %v720, 4294901760
  %722 = vmatpush1.msra.mxu0 %v721
  %v723 = vand.u32 %v190, 4294901760
  %v724 = vsub.f32 %v190, %v723
  %v725 = vand.u32 %v724, 4294901760
  %726 = vmatprep.subr.mxu0 %v725
  %v727 = vand.u32 %v189, 4294901760
  %v728 = vsub.f32 %v189, %v727
  %v729 = vand.u32 %v728, 4294901760
  %730 = vmatpush1.msra.mxu0 %v729
  %731 = vmatprep.subr.mxu0 0.0
  %732 = vmatpush1.msra.mxu0 0.0
  %733 = vmatprep.subr.mxu0 0.0
  %734 = vmatpush1.msra.mxu0 0.0
  %735 = vmatprep.subr.mxu0 0.0
  %736 = vmatpush1.msra.mxu0 0.0
  %737 = vmatprep.subr.mxu0 0.0
  %738 = vmatpush1.msra.mxu0 0.0
  %739 = vmatprep.subr.mxu0 0.0
  %740 = vmatpush1.msra.mxu0 0.0
  %741 = vmatprep.subr.mxu0 0.0
  %742 = vmatpush1.msra.mxu0 0.0
  %743 = vmatprep.subr.mxu0 0.0
  %744 = vmatpush1.msra.mxu0 0.0
  %745 = vmatprep.subr.mxu0 0.0
  %746 = vmatpush1.msra.mxu0 0.0
  %747 = vmatprep.subr.mxu0 0.0
  %748 = vmatpush1.msra.mxu0 0.0
  %749 = vmatprep.subr.mxu0 0.0
  %750 = vmatpush1.msra.mxu0 0.0
  %751 = vmatprep.subr.mxu0 0.0
  %752 = vmatpush1.msra.mxu0 0.0
  %753 = vmatprep.subr.mxu0 0.0
  %754 = vmatpush1.msra.mxu0 0.0
  %755 = vmatprep.subr.mxu0 0.0
  %756 = vmatpush1.msra.mxu0 0.0
  %757 = vmatprep.subr.mxu0 0.0
  %758 = vmatpush1.msra.mxu0 0.0
  %759 = vmatprep.subr.mxu0 0.0
  %760 = vmatpush1.msra.mxu0 0.0
  %761 = vmatprep.subr.mxu0 0.0
  %762 = vmatpush1.msra.mxu0 0.0
  %763 = vmatprep.subr.mxu0 0.0
  %764 = vmatpush1.msra.mxu0 0.0
  %765 = vmatprep.subr.mxu0 0.0
  %766 = vmatpush1.msra.mxu0 0.0
  %767 = vmatprep.subr.mxu0 0.0
  %768 = vmatpush1.msra.mxu0 0.0
  %769 = vmatprep.subr.mxu0 0.0
  %770 = vmatpush1.msra.mxu0 0.0
  %771 = vmatprep.subr.mxu0 0.0
  %772 = vmatpush1.msra.mxu0 0.0
  %773 = vmatprep.subr.mxu0 0.0
  %774 = vmatpush1.msra.mxu0 0.0
  %775 = vmatprep.subr.mxu0 0.0
  %776 = vmatpush1.msra.mxu0 0.0
  %777 = vmatprep.mubr.f32.mxu0 0.0
  %v778 = vand.u32 %v200, 4294901760
  %779 = vmatmul.mubr.f32.gmra.mrb[0].mxu0 %v778
  %v780 = vpop.f32.mrb[0].mxu0
  %v781 = vadd.f32 %v655, %v780
  %v782 = vpop.f32.mrb[0].mxu0
  %v783 = vadd.f32 %v657, %v782
  %784 = vdwg.mxu0
  %v785 = vand.u32 %v93, 4294901760
  %786 = vmatprep.subr.mxu0 %v785
  %v787 = vand.u32 %v92, 4294901760
  %788 = vmatpush1.msra.mxu0 %v787
  %v789 = vand.u32 %v106, 4294901760
  %790 = vmatprep.subr.mxu0 %v789
  %v791 = vand.u32 %v105, 4294901760
  %792 = vmatpush1.msra.mxu0 %v791
  %v793 = vand.u32 %v119, 4294901760
  %794 = vmatprep.subr.mxu0 %v793
  %v795 = vand.u32 %v118, 4294901760
  %796 = vmatpush1.msra.mxu0 %v795
  %v797 = vand.u32 %v132, 4294901760
  %798 = vmatprep.subr.mxu0 %v797
  %v799 = vand.u32 %v131, 4294901760
  %800 = vmatpush1.msra.mxu0 %v799
  %v801 = vand.u32 %v138, 4294901760
  %802 = vmatprep.subr.mxu0 %v801
  %v803 = vand.u32 %v137, 4294901760
  %804 = vmatpush1.msra.mxu0 %v803
  %v805 = vand.u32 %v151, 4294901760
  %806 = vmatprep.subr.mxu0 %v805
  %v807 = vand.u32 %v150, 4294901760
  %808 = vmatpush1.msra.mxu0 %v807
  %v809 = vand.u32 %v164, 4294901760
  %810 = vmatprep.subr.mxu0 %v809
  %v811 = vand.u32 %v163, 4294901760
  %812 = vmatpush1.msra.mxu0 %v811
  %v813 = vand.u32 %v177, 4294901760
  %814 = vmatprep.subr.mxu0 %v813
  %v815 = vand.u32 %v176, 4294901760
  %816 = vmatpush1.msra.mxu0 %v815
  %v817 = vand.u32 %v190, 4294901760
  %818 = vmatprep.subr.mxu0 %v817
  %v819 = vand.u32 %v189, 4294901760
  %820 = vmatpush1.msra.mxu0 %v819
  %821 = vmatprep.subr.mxu0 0.0
  %822 = vmatpush1.msra.mxu0 0.0
  %823 = vmatprep.subr.mxu0 0.0
  %824 = vmatpush1.msra.mxu0 0.0
  %825 = vmatprep.subr.mxu0 0.0
  %826 = vmatpush1.msra.mxu0 0.0
  %827 = vmatprep.subr.mxu0 0.0
  %828 = vmatpush1.msra.mxu0 0.0
  %829 = vmatprep.subr.mxu0 0.0
  %830 = vmatpush1.msra.mxu0 0.0
  %831 = vmatprep.subr.mxu0 0.0
  %832 = vmatpush1.msra.mxu0 0.0
  %833 = vmatprep.subr.mxu0 0.0
  %834 = vmatpush1.msra.mxu0 0.0
  %835 = vmatprep.subr.mxu0 0.0
  %836 = vmatpush1.msra.mxu0 0.0
  %837 = vmatprep.subr.mxu0 0.0
  %838 = vmatpush1.msra.mxu0 0.0
  %839 = vmatprep.subr.mxu0 0.0
  %840 = vmatpush1.msra.mxu0 0.0
  %841 = vmatprep.subr.mxu0 0.0
  %842 = vmatpush1.msra.mxu0 0.0
  %843 = vmatprep.subr.mxu0 0.0
  %844 = vmatpush1.msra.mxu0 0.0
  %845 = vmatprep.subr.mxu0 0.0
  %846 = vmatpush1.msra.mxu0 0.0
  %847 = vmatprep.subr.mxu0 0.0
  %848 = vmatpush1.msra.mxu0 0.0
  %849 = vmatprep.subr.mxu0 0.0
  %850 = vmatpush1.msra.mxu0 0.0
  %851 = vmatprep.subr.mxu0 0.0
  %852 = vmatpush1.msra.mxu0 0.0
  %853 = vmatprep.subr.mxu0 0.0
  %854 = vmatpush1.msra.mxu0 0.0
  %855 = vmatprep.subr.mxu0 0.0
  %856 = vmatpush1.msra.mxu0 0.0
  %857 = vmatprep.subr.mxu0 0.0
  %858 = vmatpush1.msra.mxu0 0.0
  %859 = vmatprep.subr.mxu0 0.0
  %860 = vmatpush1.msra.mxu0 0.0
  %861 = vmatprep.subr.mxu0 0.0
  %862 = vmatpush1.msra.mxu0 0.0
  %863 = vmatprep.subr.mxu0 0.0
  %864 = vmatpush1.msra.mxu0 0.0
  %865 = vmatprep.subr.mxu0 0.0
  %866 = vmatpush1.msra.mxu0 0.0
  %867 = vmatprep.mubr.f32.mxu0 0.0
  %v868 = vand.u32 %v200, 4294901760
  %869 = vmatmul.mubr.f32.gmra.mrb[0].mxu0 %v868
  %v870 = vpop.f32.mrb[0].mxu0
  %v871 = vadd.f32 %v781, %v870
  %v872 = vpop.f32.mrb[0].mxu0
  %v873 = vadd.f32 %v783, %v872
  %874 = vdwg.mxu0
  %v875 = vmax.f32 %v871, 0.0
  %v876 = vmax.f32 %v873, 0.0
  %877 = vrot.lane.b32.xlu0 %v875, 17
  %v878 = vpop.permute.xlu0 %877
  %879 = vrot.lane.b32.xlu0 %v876, 17
  %v880 = vpop.permute.xlu0 %879
  %v881 = vsel %vm85, %v878, %v880
  %v882 = vsel %vm85, %v880, %v878
  %v883 = vsel %vm90, %v882, 0.0
  %v884 = vsel %vm91, %v881, 0.0
  %885 = vrot.lane.b32.xlu0 %v875, 16
  %v886 = vpop.permute.xlu0 %885
  %887 = vrot.lane.b32.xlu0 %v876, 16
  %v888 = vpop.permute.xlu0 %887
  %v889 = vsel %vm98, %v886, %v888
  %v890 = vsel %vm98, %v888, %v886
  %v891 = vsel %vm103, %v890, 0.0
  %v892 = vsel %vm104, %v889, 0.0
  %893 = vrot.lane.b32.xlu0 %v875, 15
  %v894 = vpop.permute.xlu0 %893
  %895 = vrot.lane.b32.xlu0 %v876, 15
  %v896 = vpop.permute.xlu0 %895
  %v897 = vsel %vm111, %v894, %v896
  %v898 = vsel %vm111, %v896, %v894
  %v899 = vsel %vm116, %v898, 0.0
  %v900 = vsel %vm117, %v897, 0.0
  %901 = vrot.lane.b32.xlu0 %v875, 1
  %v902 = vpop.permute.xlu0 %901
  %903 = vrot.lane.b32.xlu0 %v876, 1
  %v904 = vpop.permute.xlu0 %903
  %v905 = vsel %vm124, %v902, %v904
  %v906 = vsel %vm124, %v904, %v902
  %v907 = vsel %vm129, %v906, 0.0
  %v908 = vsel %vm130, %v905, 0.0
  %v909 = vsel %vm135, %v875, 0.0
  %v910 = vsel %vm136, %v876, 0.0
  %911 = vrot.lane.b32.xlu0 %v875, 127
  %v912 = vpop.permute.xlu0 %911
  %913 = vrot.lane.b32.xlu0 %v876, 127
  %v914 = vpop.permute.xlu0 %913
  %v915 = vsel %vm143, %v912, %v914
  %v916 = vsel %vm143, %v914, %v912
  %v917 = vsel %vm148, %v915, 0.0
  %v918 = vsel %vm149, %v916, 0.0
  %919 = vrot.lane.b32.xlu0 %v875, 113
  %v920 = vpop.permute.xlu0 %919
  %921 = vrot.lane.b32.xlu0 %v876, 113
  %v922 = vpop.permute.xlu0 %921
  %v923 = vsel %vm156, %v920, %v922
  %v924 = vsel %vm156, %v922, %v920
  %v925 = vsel %vm161, %v923, 0.0
  %v926 = vsel %vm162, %v924, 0.0
  %927 = vrot.lane.b32.xlu0 %v875, 112
  %v928 = vpop.permute.xlu0 %927
  %929 = vrot.lane.b32.xlu0 %v876, 112
  %v930 = vpop.permute.xlu0 %929
  %v931 = vsel %vm169, %v928, %v930
  %v932 = vsel %vm169, %v930, %v928
  %v933 = vsel %vm174, %v931, 0.0
  %v934 = vsel %vm175, %v932, 0.0
  %935 = vrot.lane.b32.xlu0 %v875, 111
  %v936 = vpop.permute.xlu0 %935
  %937 = vrot.lane.b32.xlu0 %v876, 111
  %v938 = vpop.permute.xlu0 %937
  %v939 = vsel %vm182, %v936, %v938
  %v940 = vsel %vm182, %v938, %v936
  %v941 = vsel %vm187, %v939, 0.0
  %v942 = vsel %vm188, %v940, 0.0
  %v943 = vld [vmem:[%s3] sm:$0xff]
  %v944 = vld [vmem:[%s4] sm:$0xff]
  %946 = vset.pattern.permute.xlu0 0
  %947 = vperm.xlu0 %946, %v944
  %v948 = vpop.permute.xlu0 %947
  %v951 = vsel %vm198, %v943, 0
  %v953 = vand.u32 %v884, 4294901760
  %954 = vmatprep.subr.mxu0 %v953
  %v955 = vand.u32 %v883, 4294901760
  %956 = vmatpush1.msra.mxu0 %v955
  %v957 = vand.u32 %v892, 4294901760
  %958 = vmatprep.subr.mxu0 %v957
  %v959 = vand.u32 %v891, 4294901760
  %960 = vmatpush1.msra.mxu0 %v959
  %v961 = vand.u32 %v900, 4294901760
  %962 = vmatprep.subr.mxu0 %v961
  %v963 = vand.u32 %v899, 4294901760
  %964 = vmatpush1.msra.mxu0 %v963
  %v965 = vand.u32 %v908, 4294901760
  %966 = vmatprep.subr.mxu0 %v965
  %v967 = vand.u32 %v907, 4294901760
  %968 = vmatpush1.msra.mxu0 %v967
  %v969 = vand.u32 %v910, 4294901760
  %970 = vmatprep.subr.mxu0 %v969
  %v971 = vand.u32 %v909, 4294901760
  %972 = vmatpush1.msra.mxu0 %v971
  %v973 = vand.u32 %v918, 4294901760
  %974 = vmatprep.subr.mxu0 %v973
  %v975 = vand.u32 %v917, 4294901760
  %976 = vmatpush1.msra.mxu0 %v975
  %v977 = vand.u32 %v926, 4294901760
  %978 = vmatprep.subr.mxu0 %v977
  %v979 = vand.u32 %v925, 4294901760
  %980 = vmatpush1.msra.mxu0 %v979
  %v981 = vand.u32 %v934, 4294901760
  %982 = vmatprep.subr.mxu0 %v981
  %v983 = vand.u32 %v933, 4294901760
  %984 = vmatpush1.msra.mxu0 %v983
  %v985 = vand.u32 %v942, 4294901760
  %986 = vmatprep.subr.mxu0 %v985
  %v987 = vand.u32 %v941, 4294901760
  %988 = vmatpush1.msra.mxu0 %v987
  %989 = vmatprep.subr.mxu0 0.0
  %990 = vmatpush1.msra.mxu0 0.0
  %991 = vmatprep.subr.mxu0 0.0
  %992 = vmatpush1.msra.mxu0 0.0
  %993 = vmatprep.subr.mxu0 0.0
  %994 = vmatpush1.msra.mxu0 0.0
  %995 = vmatprep.subr.mxu0 0.0
  %996 = vmatpush1.msra.mxu0 0.0
  %997 = vmatprep.subr.mxu0 0.0
  %998 = vmatpush1.msra.mxu0 0.0
  %999 = vmatprep.subr.mxu0 0.0
  %1000 = vmatpush1.msra.mxu0 0.0
  %1001 = vmatprep.subr.mxu0 0.0
  %1002 = vmatpush1.msra.mxu0 0.0
  %1003 = vmatprep.subr.mxu0 0.0
  %1004 = vmatpush1.msra.mxu0 0.0
  %1005 = vmatprep.subr.mxu0 0.0
  %1006 = vmatpush1.msra.mxu0 0.0
  %1007 = vmatprep.subr.mxu0 0.0
  %1008 = vmatpush1.msra.mxu0 0.0
  %1009 = vmatprep.subr.mxu0 0.0
  %1010 = vmatpush1.msra.mxu0 0.0
  %1011 = vmatprep.subr.mxu0 0.0
  %1012 = vmatpush1.msra.mxu0 0.0
  %1013 = vmatprep.subr.mxu0 0.0
  %1014 = vmatpush1.msra.mxu0 0.0
  %1015 = vmatprep.subr.mxu0 0.0
  %1016 = vmatpush1.msra.mxu0 0.0
  %1017 = vmatprep.subr.mxu0 0.0
  %1018 = vmatpush1.msra.mxu0 0.0
  %1019 = vmatprep.subr.mxu0 0.0
  %1020 = vmatpush1.msra.mxu0 0.0
  %1021 = vmatprep.subr.mxu0 0.0
  %1022 = vmatpush1.msra.mxu0 0.0
  %1023 = vmatprep.subr.mxu0 0.0
  %1024 = vmatpush1.msra.mxu0 0.0
  %1025 = vmatprep.subr.mxu0 0.0
  %1026 = vmatpush1.msra.mxu0 0.0
  %1027 = vmatprep.subr.mxu0 0.0
  %1028 = vmatpush1.msra.mxu0 0.0
  %1029 = vmatprep.subr.mxu0 0.0
  %1030 = vmatpush1.msra.mxu0 0.0
  %1031 = vmatprep.subr.mxu0 0.0
  %1032 = vmatpush1.msra.mxu0 0.0
  %1033 = vmatprep.subr.mxu0 0.0
  %1034 = vmatpush1.msra.mxu0 0.0
  %1035 = vmatprep.mubr.f32.mxu0 0.0
  %v1036 = vand.u32 %v951, 4294901760
  %v1037 = vsub.f32 %v951, %v1036
  %v1038 = vand.u32 %v1037, 4294901760
  %v1039 = vsub.f32 %v1037, %v1038
  %v1040 = vand.u32 %v1039, 4294901760
  %1041 = vmatmul.mubr.f32.gmra.mrb[0].mxu0 %v1040
  %v1042 = vpop.f32.mrb[0].mxu0
  %v1043 = vadd.f32 %v948, %v1042
  %v1044 = vpop.f32.mrb[0].mxu0
  %v1045 = vadd.f32 %v948, %v1044
  %1046 = vdwg.mxu0
  %v1047 = vand.u32 %v884, 4294901760
  %v1048 = vsub.f32 %v884, %v1047
  %v1049 = vand.u32 %v1048, 4294901760
  %v1050 = vsub.f32 %v1048, %v1049
  %v1051 = vand.u32 %v1050, 4294901760
  %1052 = vmatprep.subr.mxu0 %v1051
  %v1053 = vand.u32 %v883, 4294901760
  %v1054 = vsub.f32 %v883, %v1053
  %v1055 = vand.u32 %v1054, 4294901760
  %v1056 = vsub.f32 %v1054, %v1055
  %v1057 = vand.u32 %v1056, 4294901760
  %1058 = vmatpush1.msra.mxu0 %v1057
  %v1059 = vand.u32 %v892, 4294901760
  %v1060 = vsub.f32 %v892, %v1059
  %v1061 = vand.u32 %v1060, 4294901760
  %v1062 = vsub.f32 %v1060, %v1061
  %v1063 = vand.u32 %v1062, 4294901760
  %1064 = vmatprep.subr.mxu0 %v1063
  %v1065 = vand.u32 %v891, 4294901760
  %v1066 = vsub.f32 %v891, %v1065
  %v1067 = vand.u32 %v1066, 4294901760
  %v1068 = vsub.f32 %v1066, %v1067
  %v1069 = vand.u32 %v1068, 4294901760
  %1070 = vmatpush1.msra.mxu0 %v1069
  %v1071 = vand.u32 %v900, 4294901760
  %v1072 = vsub.f32 %v900, %v1071
  %v1073 = vand.u32 %v1072, 4294901760
  %v1074 = vsub.f32 %v1072, %v1073
  %v1075 = vand.u32 %v1074, 4294901760
  %1076 = vmatprep.subr.mxu0 %v1075
  %v1077 = vand.u32 %v899, 4294901760
  %v1078 = vsub.f32 %v899, %v1077
  %v1079 = vand.u32 %v1078, 4294901760
  %v1080 = vsub.f32 %v1078, %v1079
  %v1081 = vand.u32 %v1080, 4294901760
  %1082 = vmatpush1.msra.mxu0 %v1081
  %v1083 = vand.u32 %v908, 4294901760
  %v1084 = vsub.f32 %v908, %v1083
  %v1085 = vand.u32 %v1084, 4294901760
  %v1086 = vsub.f32 %v1084, %v1085
  %v1087 = vand.u32 %v1086, 4294901760
  %1088 = vmatprep.subr.mxu0 %v1087
  %v1089 = vand.u32 %v907, 4294901760
  %v1090 = vsub.f32 %v907, %v1089
  %v1091 = vand.u32 %v1090, 4294901760
  %v1092 = vsub.f32 %v1090, %v1091
  %v1093 = vand.u32 %v1092, 4294901760
  %1094 = vmatpush1.msra.mxu0 %v1093
  %v1095 = vand.u32 %v910, 4294901760
  %v1096 = vsub.f32 %v910, %v1095
  %v1097 = vand.u32 %v1096, 4294901760
  %v1098 = vsub.f32 %v1096, %v1097
  %v1099 = vand.u32 %v1098, 4294901760
  %1100 = vmatprep.subr.mxu0 %v1099
  %v1101 = vand.u32 %v909, 4294901760
  %v1102 = vsub.f32 %v909, %v1101
  %v1103 = vand.u32 %v1102, 4294901760
  %v1104 = vsub.f32 %v1102, %v1103
  %v1105 = vand.u32 %v1104, 4294901760
  %1106 = vmatpush1.msra.mxu0 %v1105
  %v1107 = vand.u32 %v918, 4294901760
  %v1108 = vsub.f32 %v918, %v1107
  %v1109 = vand.u32 %v1108, 4294901760
  %v1110 = vsub.f32 %v1108, %v1109
  %v1111 = vand.u32 %v1110, 4294901760
  %1112 = vmatprep.subr.mxu0 %v1111
  %v1113 = vand.u32 %v917, 4294901760
  %v1114 = vsub.f32 %v917, %v1113
  %v1115 = vand.u32 %v1114, 4294901760
  %v1116 = vsub.f32 %v1114, %v1115
  %v1117 = vand.u32 %v1116, 4294901760
  %1118 = vmatpush1.msra.mxu0 %v1117
  %v1119 = vand.u32 %v926, 4294901760
  %v1120 = vsub.f32 %v926, %v1119
  %v1121 = vand.u32 %v1120, 4294901760
  %v1122 = vsub.f32 %v1120, %v1121
  %v1123 = vand.u32 %v1122, 4294901760
  %1124 = vmatprep.subr.mxu0 %v1123
  %v1125 = vand.u32 %v925, 4294901760
  %v1126 = vsub.f32 %v925, %v1125
  %v1127 = vand.u32 %v1126, 4294901760
  %v1128 = vsub.f32 %v1126, %v1127
  %v1129 = vand.u32 %v1128, 4294901760
  %1130 = vmatpush1.msra.mxu0 %v1129
  %v1131 = vand.u32 %v934, 4294901760
  %v1132 = vsub.f32 %v934, %v1131
  %v1133 = vand.u32 %v1132, 4294901760
  %v1134 = vsub.f32 %v1132, %v1133
  %v1135 = vand.u32 %v1134, 4294901760
  %1136 = vmatprep.subr.mxu0 %v1135
  %v1137 = vand.u32 %v933, 4294901760
  %v1138 = vsub.f32 %v933, %v1137
  %v1139 = vand.u32 %v1138, 4294901760
  %v1140 = vsub.f32 %v1138, %v1139
  %v1141 = vand.u32 %v1140, 4294901760
  %1142 = vmatpush1.msra.mxu0 %v1141
  %v1143 = vand.u32 %v942, 4294901760
  %v1144 = vsub.f32 %v942, %v1143
  %v1145 = vand.u32 %v1144, 4294901760
  %v1146 = vsub.f32 %v1144, %v1145
  %v1147 = vand.u32 %v1146, 4294901760
  %1148 = vmatprep.subr.mxu0 %v1147
  %v1149 = vand.u32 %v941, 4294901760
  %v1150 = vsub.f32 %v941, %v1149
  %v1151 = vand.u32 %v1150, 4294901760
  %v1152 = vsub.f32 %v1150, %v1151
  %v1153 = vand.u32 %v1152, 4294901760
  %1154 = vmatpush1.msra.mxu0 %v1153
  %1155 = vmatprep.subr.mxu0 0.0
  %1156 = vmatpush1.msra.mxu0 0.0
  %1157 = vmatprep.subr.mxu0 0.0
  %1158 = vmatpush1.msra.mxu0 0.0
  %1159 = vmatprep.subr.mxu0 0.0
  %1160 = vmatpush1.msra.mxu0 0.0
  %1161 = vmatprep.subr.mxu0 0.0
  %1162 = vmatpush1.msra.mxu0 0.0
  %1163 = vmatprep.subr.mxu0 0.0
  %1164 = vmatpush1.msra.mxu0 0.0
  %1165 = vmatprep.subr.mxu0 0.0
  %1166 = vmatpush1.msra.mxu0 0.0
  %1167 = vmatprep.subr.mxu0 0.0
  %1168 = vmatpush1.msra.mxu0 0.0
  %1169 = vmatprep.subr.mxu0 0.0
  %1170 = vmatpush1.msra.mxu0 0.0
  %1171 = vmatprep.subr.mxu0 0.0
  %1172 = vmatpush1.msra.mxu0 0.0
  %1173 = vmatprep.subr.mxu0 0.0
  %1174 = vmatpush1.msra.mxu0 0.0
  %1175 = vmatprep.subr.mxu0 0.0
  %1176 = vmatpush1.msra.mxu0 0.0
  %1177 = vmatprep.subr.mxu0 0.0
  %1178 = vmatpush1.msra.mxu0 0.0
  %1179 = vmatprep.subr.mxu0 0.0
  %1180 = vmatpush1.msra.mxu0 0.0
  %1181 = vmatprep.subr.mxu0 0.0
  %1182 = vmatpush1.msra.mxu0 0.0
  %1183 = vmatprep.subr.mxu0 0.0
  %1184 = vmatpush1.msra.mxu0 0.0
  %1185 = vmatprep.subr.mxu0 0.0
  %1186 = vmatpush1.msra.mxu0 0.0
  %1187 = vmatprep.subr.mxu0 0.0
  %1188 = vmatpush1.msra.mxu0 0.0
  %1189 = vmatprep.subr.mxu0 0.0
  %1190 = vmatpush1.msra.mxu0 0.0
  %1191 = vmatprep.subr.mxu0 0.0
  %1192 = vmatpush1.msra.mxu0 0.0
  %1193 = vmatprep.subr.mxu0 0.0
  %1194 = vmatpush1.msra.mxu0 0.0
  %1195 = vmatprep.subr.mxu0 0.0
  %1196 = vmatpush1.msra.mxu0 0.0
  %1197 = vmatprep.subr.mxu0 0.0
  %1198 = vmatpush1.msra.mxu0 0.0
  %1199 = vmatprep.subr.mxu0 0.0
  %1200 = vmatpush1.msra.mxu0 0.0
  %1201 = vmatprep.mubr.f32.mxu0 0.0
  %v1202 = vand.u32 %v951, 4294901760
  %1203 = vmatmul.mubr.f32.gmra.mrb[0].mxu0 %v1202
  %v1204 = vpop.f32.mrb[0].mxu0
  %v1205 = vadd.f32 %v1043, %v1204
  %v1206 = vpop.f32.mrb[0].mxu0
  %v1207 = vadd.f32 %v1045, %v1206
  %1208 = vdwg.mxu0
  %v1209 = vand.u32 %v884, 4294901760
  %v1210 = vsub.f32 %v884, %v1209
  %1211 = vmatprep.subr.mxu0 %v1210
  %v1212 = vand.u32 %v883, 4294901760
  %v1213 = vsub.f32 %v883, %v1212
  %1214 = vmatpush1.msra.mxu0 %v1213
  %v1215 = vand.u32 %v892, 4294901760
  %v1216 = vsub.f32 %v892, %v1215
  %1217 = vmatprep.subr.mxu0 %v1216
  %v1218 = vand.u32 %v891, 4294901760
  %v1219 = vsub.f32 %v891, %v1218
  %1220 = vmatpush1.msra.mxu0 %v1219
  %v1221 = vand.u32 %v900, 4294901760
  %v1222 = vsub.f32 %v900, %v1221
  %1223 = vmatprep.subr.mxu0 %v1222
  %v1224 = vand.u32 %v899, 4294901760
  %v1225 = vsub.f32 %v899, %v1224
  %1226 = vmatpush1.msra.mxu0 %v1225
  %v1227 = vand.u32 %v908, 4294901760
  %v1228 = vsub.f32 %v908, %v1227
  %1229 = vmatprep.subr.mxu0 %v1228
  %v1230 = vand.u32 %v907, 4294901760
  %v1231 = vsub.f32 %v907, %v1230
  %1232 = vmatpush1.msra.mxu0 %v1231
  %v1233 = vand.u32 %v910, 4294901760
  %v1234 = vsub.f32 %v910, %v1233
  %1235 = vmatprep.subr.mxu0 %v1234
  %v1236 = vand.u32 %v909, 4294901760
  %v1237 = vsub.f32 %v909, %v1236
  %1238 = vmatpush1.msra.mxu0 %v1237
  %v1239 = vand.u32 %v918, 4294901760
  %v1240 = vsub.f32 %v918, %v1239
  %1241 = vmatprep.subr.mxu0 %v1240
  %v1242 = vand.u32 %v917, 4294901760
  %v1243 = vsub.f32 %v917, %v1242
  %1244 = vmatpush1.msra.mxu0 %v1243
  %v1245 = vand.u32 %v926, 4294901760
  %v1246 = vsub.f32 %v926, %v1245
  %1247 = vmatprep.subr.mxu0 %v1246
  %v1248 = vand.u32 %v925, 4294901760
  %v1249 = vsub.f32 %v925, %v1248
  %1250 = vmatpush1.msra.mxu0 %v1249
  %v1251 = vand.u32 %v934, 4294901760
  %v1252 = vsub.f32 %v934, %v1251
  %1253 = vmatprep.subr.mxu0 %v1252
  %v1254 = vand.u32 %v933, 4294901760
  %v1255 = vsub.f32 %v933, %v1254
  %1256 = vmatpush1.msra.mxu0 %v1255
  %v1257 = vand.u32 %v942, 4294901760
  %v1258 = vsub.f32 %v942, %v1257
  %1259 = vmatprep.subr.mxu0 %v1258
  %v1260 = vand.u32 %v941, 4294901760
  %v1261 = vsub.f32 %v941, %v1260
  %1262 = vmatpush1.msra.mxu0 %v1261
  %1263 = vmatprep.subr.mxu0 0.0
  %1264 = vmatpush1.msra.mxu0 0.0
  %1265 = vmatprep.subr.mxu0 0.0
  %1266 = vmatpush1.msra.mxu0 0.0
  %1267 = vmatprep.subr.mxu0 0.0
  %1268 = vmatpush1.msra.mxu0 0.0
  %1269 = vmatprep.subr.mxu0 0.0
  %1270 = vmatpush1.msra.mxu0 0.0
  %1271 = vmatprep.subr.mxu0 0.0
  %1272 = vmatpush1.msra.mxu0 0.0
  %1273 = vmatprep.subr.mxu0 0.0
  %1274 = vmatpush1.msra.mxu0 0.0
  %1275 = vmatprep.subr.mxu0 0.0
  %1276 = vmatpush1.msra.mxu0 0.0
  %1277 = vmatprep.subr.mxu0 0.0
  %1278 = vmatpush1.msra.mxu0 0.0
  %1279 = vmatprep.subr.mxu0 0.0
  %1280 = vmatpush1.msra.mxu0 0.0
  %1281 = vmatprep.subr.mxu0 0.0
  %1282 = vmatpush1.msra.mxu0 0.0
  %1283 = vmatprep.subr.mxu0 0.0
  %1284 = vmatpush1.msra.mxu0 0.0
  %1285 = vmatprep.subr.mxu0 0.0
  %1286 = vmatpush1.msra.mxu0 0.0
  %1287 = vmatprep.subr.mxu0 0.0
  %1288 = vmatpush1.msra.mxu0 0.0
  %1289 = vmatprep.subr.mxu0 0.0
  %1290 = vmatpush1.msra.mxu0 0.0
  %1291 = vmatprep.subr.mxu0 0.0
  %1292 = vmatpush1.msra.mxu0 0.0
  %1293 = vmatprep.subr.mxu0 0.0
  %1294 = vmatpush1.msra.mxu0 0.0
  %1295 = vmatprep.subr.mxu0 0.0
  %1296 = vmatpush1.msra.mxu0 0.0
  %1297 = vmatprep.subr.mxu0 0.0
  %1298 = vmatpush1.msra.mxu0 0.0
  %1299 = vmatprep.subr.mxu0 0.0
  %1300 = vmatpush1.msra.mxu0 0.0
  %1301 = vmatprep.subr.mxu0 0.0
  %1302 = vmatpush1.msra.mxu0 0.0
  %1303 = vmatprep.subr.mxu0 0.0
  %1304 = vmatpush1.msra.mxu0 0.0
  %1305 = vmatprep.subr.mxu0 0.0
  %1306 = vmatpush1.msra.mxu0 0.0
  %1307 = vmatprep.subr.mxu0 0.0
  %1308 = vmatpush1.msra.mxu0 0.0
  %1309 = vmatprep.mubr.f32.mxu0 0.0
  %v1310 = vand.u32 %v951, 4294901760
  %v1311 = vsub.f32 %v951, %v1310
  %1312 = vmatmul.mubr.f32.gmra.mrb[0].mxu0 %v1311
  %v1313 = vpop.f32.mrb[0].mxu0
  %v1314 = vadd.f32 %v1205, %v1313
  %v1315 = vpop.f32.mrb[0].mxu0
  %v1316 = vadd.f32 %v1207, %v1315
  %1317 = vdwg.mxu0
  %v1318 = vand.u32 %v884, 4294901760
  %1319 = vmatprep.subr.mxu0 %v1318
  %v1320 = vand.u32 %v883, 4294901760
  %1321 = vmatpush1.msra.mxu0 %v1320
  %v1322 = vand.u32 %v892, 4294901760
  %1323 = vmatprep.subr.mxu0 %v1322
  %v1324 = vand.u32 %v891, 4294901760
  %1325 = vmatpush1.msra.mxu0 %v1324
  %v1326 = vand.u32 %v900, 4294901760
  %1327 = vmatprep.subr.mxu0 %v1326
  %v1328 = vand.u32 %v899, 4294901760
  %1329 = vmatpush1.msra.mxu0 %v1328
  %v1330 = vand.u32 %v908, 4294901760
  %1331 = vmatprep.subr.mxu0 %v1330
  %v1332 = vand.u32 %v907, 4294901760
  %1333 = vmatpush1.msra.mxu0 %v1332
  %v1334 = vand.u32 %v910, 4294901760
  %1335 = vmatprep.subr.mxu0 %v1334
  %v1336 = vand.u32 %v909, 4294901760
  %1337 = vmatpush1.msra.mxu0 %v1336
  %v1338 = vand.u32 %v918, 4294901760
  %1339 = vmatprep.subr.mxu0 %v1338
  %v1340 = vand.u32 %v917, 4294901760
  %1341 = vmatpush1.msra.mxu0 %v1340
  %v1342 = vand.u32 %v926, 4294901760
  %1343 = vmatprep.subr.mxu0 %v1342
  %v1344 = vand.u32 %v925, 4294901760
  %1345 = vmatpush1.msra.mxu0 %v1344
  %v1346 = vand.u32 %v934, 4294901760
  %1347 = vmatprep.subr.mxu0 %v1346
  %v1348 = vand.u32 %v933, 4294901760
  %1349 = vmatpush1.msra.mxu0 %v1348
  %v1350 = vand.u32 %v942, 4294901760
  %1351 = vmatprep.subr.mxu0 %v1350
  %v1352 = vand.u32 %v941, 4294901760
  %1353 = vmatpush1.msra.mxu0 %v1352
  %1354 = vmatprep.subr.mxu0 0.0
  %1355 = vmatpush1.msra.mxu0 0.0
  %1356 = vmatprep.subr.mxu0 0.0
  %1357 = vmatpush1.msra.mxu0 0.0
  %1358 = vmatprep.subr.mxu0 0.0
  %1359 = vmatpush1.msra.mxu0 0.0
  %1360 = vmatprep.subr.mxu0 0.0
  %1361 = vmatpush1.msra.mxu0 0.0
  %1362 = vmatprep.subr.mxu0 0.0
  %1363 = vmatpush1.msra.mxu0 0.0
  %1364 = vmatprep.subr.mxu0 0.0
  %1365 = vmatpush1.msra.mxu0 0.0
  %1366 = vmatprep.subr.mxu0 0.0
  %1367 = vmatpush1.msra.mxu0 0.0
  %1368 = vmatprep.subr.mxu0 0.0
  %1369 = vmatpush1.msra.mxu0 0.0
  %1370 = vmatprep.subr.mxu0 0.0
  %1371 = vmatpush1.msra.mxu0 0.0
  %1372 = vmatprep.subr.mxu0 0.0
  %1373 = vmatpush1.msra.mxu0 0.0
  %1374 = vmatprep.subr.mxu0 0.0
  %1375 = vmatpush1.msra.mxu0 0.0
  %1376 = vmatprep.subr.mxu0 0.0
  %1377 = vmatpush1.msra.mxu0 0.0
  %1378 = vmatprep.subr.mxu0 0.0
  %1379 = vmatpush1.msra.mxu0 0.0
  %1380 = vmatprep.subr.mxu0 0.0
  %1381 = vmatpush1.msra.mxu0 0.0
  %1382 = vmatprep.subr.mxu0 0.0
  %1383 = vmatpush1.msra.mxu0 0.0
  %1384 = vmatprep.subr.mxu0 0.0
  %1385 = vmatpush1.msra.mxu0 0.0
  %1386 = vmatprep.subr.mxu0 0.0
  %1387 = vmatpush1.msra.mxu0 0.0
  %1388 = vmatprep.subr.mxu0 0.0
  %1389 = vmatpush1.msra.mxu0 0.0
  %1390 = vmatprep.subr.mxu0 0.0
  %1391 = vmatpush1.msra.mxu0 0.0
  %1392 = vmatprep.subr.mxu0 0.0
  %1393 = vmatpush1.msra.mxu0 0.0
  %1394 = vmatprep.subr.mxu0 0.0
  %1395 = vmatpush1.msra.mxu0 0.0
  %1396 = vmatprep.subr.mxu0 0.0
  %1397 = vmatpush1.msra.mxu0 0.0
  %1398 = vmatprep.subr.mxu0 0.0
  %1399 = vmatpush1.msra.mxu0 0.0
  %1400 = vmatprep.mubr.f32.mxu0 0.0
  %v1401 = vand.u32 %v951, 4294901760
  %v1402 = vsub.f32 %v951, %v1401
  %v1403 = vand.u32 %v1402, 4294901760
  %1404 = vmatmul.mubr.f32.gmra.mrb[0].mxu0 %v1403
  %v1405 = vpop.f32.mrb[0].mxu0
  %v1406 = vadd.f32 %v1314, %v1405
  %v1407 = vpop.f32.mrb[0].mxu0
  %v1408 = vadd.f32 %v1316, %v1407
  %1409 = vdwg.mxu0
  %v1410 = vand.u32 %v884, 4294901760
  %v1411 = vsub.f32 %v884, %v1410
  %v1412 = vand.u32 %v1411, 4294901760
  %1413 = vmatprep.subr.mxu0 %v1412
  %v1414 = vand.u32 %v883, 4294901760
  %v1415 = vsub.f32 %v883, %v1414
  %v1416 = vand.u32 %v1415, 4294901760
  %1417 = vmatpush1.msra.mxu0 %v1416
  %v1418 = vand.u32 %v892, 4294901760
  %v1419 = vsub.f32 %v892, %v1418
  %v1420 = vand.u32 %v1419, 4294901760
  %1421 = vmatprep.subr.mxu0 %v1420
  %v1422 = vand.u32 %v891, 4294901760
  %v1423 = vsub.f32 %v891, %v1422
  %v1424 = vand.u32 %v1423, 4294901760
  %1425 = vmatpush1.msra.mxu0 %v1424
  %v1426 = vand.u32 %v900, 4294901760
  %v1427 = vsub.f32 %v900, %v1426
  %v1428 = vand.u32 %v1427, 4294901760
  %1429 = vmatprep.subr.mxu0 %v1428
  %v1430 = vand.u32 %v899, 4294901760
  %v1431 = vsub.f32 %v899, %v1430
  %v1432 = vand.u32 %v1431, 4294901760
  %1433 = vmatpush1.msra.mxu0 %v1432
  %v1434 = vand.u32 %v908, 4294901760
  %v1435 = vsub.f32 %v908, %v1434
  %v1436 = vand.u32 %v1435, 4294901760
  %1437 = vmatprep.subr.mxu0 %v1436
  %v1438 = vand.u32 %v907, 4294901760
  %v1439 = vsub.f32 %v907, %v1438
  %v1440 = vand.u32 %v1439, 4294901760
  %1441 = vmatpush1.msra.mxu0 %v1440
  %v1442 = vand.u32 %v910, 4294901760
  %v1443 = vsub.f32 %v910, %v1442
  %v1444 = vand.u32 %v1443, 4294901760
  %1445 = vmatprep.subr.mxu0 %v1444
  %v1446 = vand.u32 %v909, 4294901760
  %v1447 = vsub.f32 %v909, %v1446
  %v1448 = vand.u32 %v1447, 4294901760
  %1449 = vmatpush1.msra.mxu0 %v1448
  %v1450 = vand.u32 %v918, 4294901760
  %v1451 = vsub.f32 %v918, %v1450
  %v1452 = vand.u32 %v1451, 4294901760
  %1453 = vmatprep.subr.mxu0 %v1452
  %v1454 = vand.u32 %v917, 4294901760
  %v1455 = vsub.f32 %v917, %v1454
  %v1456 = vand.u32 %v1455, 4294901760
  %1457 = vmatpush1.msra.mxu0 %v1456
  %v1458 = vand.u32 %v926, 4294901760
  %v1459 = vsub.f32 %v926, %v1458
  %v1460 = vand.u32 %v1459, 4294901760
  %1461 = vmatprep.subr.mxu0 %v1460
  %v1462 = vand.u32 %v925, 4294901760
  %v1463 = vsub.f32 %v925, %v1462
  %v1464 = vand.u32 %v1463, 4294901760
  %1465 = vmatpush1.msra.mxu0 %v1464
  %v1466 = vand.u32 %v934, 4294901760
  %v1467 = vsub.f32 %v934, %v1466
  %v1468 = vand.u32 %v1467, 4294901760
  %1469 = vmatprep.subr.mxu0 %v1468
  %v1470 = vand.u32 %v933, 4294901760
  %v1471 = vsub.f32 %v933, %v1470
  %v1472 = vand.u32 %v1471, 4294901760
  %1473 = vmatpush1.msra.mxu0 %v1472
  %v1474 = vand.u32 %v942, 4294901760
  %v1475 = vsub.f32 %v942, %v1474
  %v1476 = vand.u32 %v1475, 4294901760
  %1477 = vmatprep.subr.mxu0 %v1476
  %v1478 = vand.u32 %v941, 4294901760
  %v1479 = vsub.f32 %v941, %v1478
  %v1480 = vand.u32 %v1479, 4294901760
  %1481 = vmatpush1.msra.mxu0 %v1480
  %1482 = vmatprep.subr.mxu0 0.0
  %1483 = vmatpush1.msra.mxu0 0.0
  %1484 = vmatprep.subr.mxu0 0.0
  %1485 = vmatpush1.msra.mxu0 0.0
  %1486 = vmatprep.subr.mxu0 0.0
  %1487 = vmatpush1.msra.mxu0 0.0
  %1488 = vmatprep.subr.mxu0 0.0
  %1489 = vmatpush1.msra.mxu0 0.0
  %1490 = vmatprep.subr.mxu0 0.0
  %1491 = vmatpush1.msra.mxu0 0.0
  %1492 = vmatprep.subr.mxu0 0.0
  %1493 = vmatpush1.msra.mxu0 0.0
  %1494 = vmatprep.subr.mxu0 0.0
  %1495 = vmatpush1.msra.mxu0 0.0
  %1496 = vmatprep.subr.mxu0 0.0
  %1497 = vmatpush1.msra.mxu0 0.0
  %1498 = vmatprep.subr.mxu0 0.0
  %1499 = vmatpush1.msra.mxu0 0.0
  %1500 = vmatprep.subr.mxu0 0.0
  %1501 = vmatpush1.msra.mxu0 0.0
  %1502 = vmatprep.subr.mxu0 0.0
  %1503 = vmatpush1.msra.mxu0 0.0
  %1504 = vmatprep.subr.mxu0 0.0
  %1505 = vmatpush1.msra.mxu0 0.0
  %1506 = vmatprep.subr.mxu0 0.0
  %1507 = vmatpush1.msra.mxu0 0.0
  %1508 = vmatprep.subr.mxu0 0.0
  %1509 = vmatpush1.msra.mxu0 0.0
  %1510 = vmatprep.subr.mxu0 0.0
  %1511 = vmatpush1.msra.mxu0 0.0
  %1512 = vmatprep.subr.mxu0 0.0
  %1513 = vmatpush1.msra.mxu0 0.0
  %1514 = vmatprep.subr.mxu0 0.0
  %1515 = vmatpush1.msra.mxu0 0.0
  %1516 = vmatprep.subr.mxu0 0.0
  %1517 = vmatpush1.msra.mxu0 0.0
  %1518 = vmatprep.subr.mxu0 0.0
  %1519 = vmatpush1.msra.mxu0 0.0
  %1520 = vmatprep.subr.mxu0 0.0
  %1521 = vmatpush1.msra.mxu0 0.0
  %1522 = vmatprep.subr.mxu0 0.0
  %1523 = vmatpush1.msra.mxu0 0.0
  %1524 = vmatprep.subr.mxu0 0.0
  %1525 = vmatpush1.msra.mxu0 0.0
  %1526 = vmatprep.subr.mxu0 0.0
  %1527 = vmatpush1.msra.mxu0 0.0
  %1528 = vmatprep.mubr.f32.mxu0 0.0
  %v1529 = vand.u32 %v951, 4294901760
  %1530 = vmatmul.mubr.f32.gmra.mrb[0].mxu0 %v1529
  %v1531 = vpop.f32.mrb[0].mxu0
  %v1532 = vadd.f32 %v1406, %v1531
  %v1533 = vpop.f32.mrb[0].mxu0
  %v1534 = vadd.f32 %v1408, %v1533
  %1535 = vdwg.mxu0
  %v1536 = vand.u32 %v884, 4294901760
  %1537 = vmatprep.subr.mxu0 %v1536
  %v1538 = vand.u32 %v883, 4294901760
  %1539 = vmatpush1.msra.mxu0 %v1538
  %v1540 = vand.u32 %v892, 4294901760
  %1541 = vmatprep.subr.mxu0 %v1540
  %v1542 = vand.u32 %v891, 4294901760
  %1543 = vmatpush1.msra.mxu0 %v1542
  %v1544 = vand.u32 %v900, 4294901760
  %1545 = vmatprep.subr.mxu0 %v1544
  %v1546 = vand.u32 %v899, 4294901760
  %1547 = vmatpush1.msra.mxu0 %v1546
  %v1548 = vand.u32 %v908, 4294901760
  %1549 = vmatprep.subr.mxu0 %v1548
  %v1550 = vand.u32 %v907, 4294901760
  %1551 = vmatpush1.msra.mxu0 %v1550
  %v1552 = vand.u32 %v910, 4294901760
  %1553 = vmatprep.subr.mxu0 %v1552
  %v1554 = vand.u32 %v909, 4294901760
  %1555 = vmatpush1.msra.mxu0 %v1554
  %v1556 = vand.u32 %v918, 4294901760
  %1557 = vmatprep.subr.mxu0 %v1556
  %v1558 = vand.u32 %v917, 4294901760
  %1559 = vmatpush1.msra.mxu0 %v1558
  %v1560 = vand.u32 %v926, 4294901760
  %1561 = vmatprep.subr.mxu0 %v1560
  %v1562 = vand.u32 %v925, 4294901760
  %1563 = vmatpush1.msra.mxu0 %v1562
  %v1564 = vand.u32 %v934, 4294901760
  %1565 = vmatprep.subr.mxu0 %v1564
  %v1566 = vand.u32 %v933, 4294901760
  %1567 = vmatpush1.msra.mxu0 %v1566
  %v1568 = vand.u32 %v942, 4294901760
  %1569 = vmatprep.subr.mxu0 %v1568
  %v1570 = vand.u32 %v941, 4294901760
  %1571 = vmatpush1.msra.mxu0 %v1570
  %1572 = vmatprep.subr.mxu0 0.0
  %1573 = vmatpush1.msra.mxu0 0.0
  %1574 = vmatprep.subr.mxu0 0.0
  %1575 = vmatpush1.msra.mxu0 0.0
  %1576 = vmatprep.subr.mxu0 0.0
  %1577 = vmatpush1.msra.mxu0 0.0
  %1578 = vmatprep.subr.mxu0 0.0
  %1579 = vmatpush1.msra.mxu0 0.0
  %1580 = vmatprep.subr.mxu0 0.0
  %1581 = vmatpush1.msra.mxu0 0.0
  %1582 = vmatprep.subr.mxu0 0.0
  %1583 = vmatpush1.msra.mxu0 0.0
  %1584 = vmatprep.subr.mxu0 0.0
  %1585 = vmatpush1.msra.mxu0 0.0
  %1586 = vmatprep.subr.mxu0 0.0
  %1587 = vmatpush1.msra.mxu0 0.0
  %1588 = vmatprep.subr.mxu0 0.0
  %1589 = vmatpush1.msra.mxu0 0.0
  %1590 = vmatprep.subr.mxu0 0.0
  %1591 = vmatpush1.msra.mxu0 0.0
  %1592 = vmatprep.subr.mxu0 0.0
  %1593 = vmatpush1.msra.mxu0 0.0
  %1594 = vmatprep.subr.mxu0 0.0
  %1595 = vmatpush1.msra.mxu0 0.0
  %1596 = vmatprep.subr.mxu0 0.0
  %1597 = vmatpush1.msra.mxu0 0.0
  %1598 = vmatprep.subr.mxu0 0.0
  %1599 = vmatpush1.msra.mxu0 0.0
  %1600 = vmatprep.subr.mxu0 0.0
  %1601 = vmatpush1.msra.mxu0 0.0
  %1602 = vmatprep.subr.mxu0 0.0
  %1603 = vmatpush1.msra.mxu0 0.0
  %1604 = vmatprep.subr.mxu0 0.0
  %1605 = vmatpush1.msra.mxu0 0.0
  %1606 = vmatprep.subr.mxu0 0.0
  %1607 = vmatpush1.msra.mxu0 0.0
  %1608 = vmatprep.subr.mxu0 0.0
  %1609 = vmatpush1.msra.mxu0 0.0
  %1610 = vmatprep.subr.mxu0 0.0
  %1611 = vmatpush1.msra.mxu0 0.0
  %1612 = vmatprep.subr.mxu0 0.0
  %1613 = vmatpush1.msra.mxu0 0.0
  %1614 = vmatprep.subr.mxu0 0.0
  %1615 = vmatpush1.msra.mxu0 0.0
  %1616 = vmatprep.subr.mxu0 0.0
  %1617 = vmatpush1.msra.mxu0 0.0
  %1618 = vmatprep.mubr.f32.mxu0 0.0
  %v1619 = vand.u32 %v951, 4294901760
  %1620 = vmatmul.mubr.f32.gmra.mrb[0].mxu0 %v1619
  %v1621 = vpop.f32.mrb[0].mxu0
  %v1622 = vadd.f32 %v1532, %v1621
  %v1623 = vpop.f32.mrb[0].mxu0
  %v1624 = vadd.f32 %v1534, %v1623
  %1625 = vdwg.mxu0
  %v1626 = vmax.f32 %v1622, 0.0
  %v1627 = vmax.f32 %v1624, 0.0
  %v1628 = vadd.f32 %v1626, %v20
  %v1629 = vadd.f32 %v1627, %v21
  %v1630 = vmax.f32 %v1628, 0.0
  %v1631 = vmax.f32 %v1629, 0.0
  %1632 = vst [vmem:[%s5] sm:$0xff] %v1630
  %1633 = vst [vmem:[%s5 + $0x8] sm:$0xff] %v1631
  // Predicated region
  $region22: #{resnet_block_forward.1} parent=0 // pred_check
    _
  $region23: #{resnet_block_forward.1} parent=0 // pred_check_branch
    %1635 = sbr.rel (0) target = $region25
  $region24: #{resnet_block_forward.1} parent=0 // pred_region
    _
  $region25: #{resnet_block_forward.1} parent=0 // pred_fallthru
    _
  // Predicated region
  $region26: #{resnet_block_forward.1} parent=0 // pred_check
    _
  $region27: #{resnet_block_forward.1} parent=0 // pred_check_branch
    %1637 = sbr.rel (0) target = $region29
  $region28: #{resnet_block_forward.1} parent=0 // pred_region
    _
  $region29: #{resnet_block_forward.1} parent=0 // pred_fallthru
    _

</llo_original>
